<compile_context>
chip_gen: v6e
topology: v6e:2x2x1
jax: 0.10.0
libtpu: 0.0.40
codegen_flags: <defaults>
</compile_context>

<pallas_src>
import jax
import jax.numpy as jnp
from jax import lax
from jax.experimental import pallas as pl
from jax.experimental.pallas import tpu as pltpu


# ---------------------------------------------------------------------------
# Pallas kernels
# ---------------------------------------------------------------------------
def _deconv_in_relu_kernel(p_ref, w_ref, b_ref, o_ref):
    """Fused sub-pixel ConvTranspose2d(k4,s2,p1) + bias + InstanceNorm + ReLU (one batch item).

    p_ref : (1, 4, K, HW)   bf16  per-phase im2col patches (2x2 taps, K = 4*Cin)
    w_ref : (4, OC, K)      bf16  per-phase weight matrices
    b_ref : (OC, 1)         f32   bias
    o_ref : (1, 4, OC, HW)  f32   per-phase outputs (phases interleaved outside)
    """
    hw = p_ref.shape[-1]
    oc = b_ref.shape[0]
    inv_n = 1.0 / (4.0 * hw)          # total pixels per channel = (2H)*(2W) = 4*HW

    ys = []
    s = jnp.zeros((oc, 1), jnp.float32)
    for ph in range(4):
        y = jnp.dot(w_ref[ph, :, :], p_ref[0, ph, :, :],
                    preferred_element_type=jnp.float32)
        y = y + b_ref[...]
        ys.append(y)
        s = s + jnp.sum(y, axis=-1, keepdims=True)
    mean = s * inv_n

    v = jnp.zeros((oc, 1), jnp.float32)
    for ph in range(4):
        d = ys[ph] - mean
        v = v + jnp.sum(d * d, axis=-1, keepdims=True)
    inv_std = lax.rsqrt(v * inv_n + 1e-5)   # biased var + eps=1e-5 (PyTorch InstanceNorm2d)

    for ph in range(4):
        o_ref[0, ph, :, :] = jnp.maximum((ys[ph] - mean) * inv_std, 0.0)


def _conv_bias_kernel(p_ref, w_ref, b_ref, o_ref):
    """Final Conv2d(k7) as (OC, K) @ (K, pixels) + bias (one batch item)."""
    y = jnp.dot(w_ref[...], p_ref[0, :, :], preferred_element_type=jnp.float32)
    o_ref[0, :, :] = y + b_ref[...]


# ---------------------------------------------------------------------------
# Layer wrappers (XLA does only window-gather / pad / interleave layout glue)
# ---------------------------------------------------------------------------
_KIDX = {0: (3, 1), 1: (2, 0)}   # kernel-tap indices per output phase (stride=2, pad=1, k=4)


def _subpixel_patches(x, w):
    """Build per-phase 2x2-tap patches (N,4,4*Cin,H*W) and weights (4,Cout,4*Cin)."""
    N, Cin, H, W = x.shape
    Cout = w.shape[1]
    xp = jnp.pad(x, ((0, 0), (0, 0), (1, 1), (1, 1)))
    patch_list, wmat_list = [], []
    for py in range(2):
        for px in range(2):
            wins = [xp[:, :, py + j:py + j + H, px + i:px + i + W]
                    for j in range(2) for i in range(2)]
            ph = jnp.stack(wins, axis=2)                              # (N, Cin, 4, H, W)
            patch_list.append(ph.reshape(N, Cin * 4, H * W))
            wsub = w[:, :, jnp.array(_KIDX[py]), :][:, :, :, jnp.array(_KIDX[px])]
            wmat_list.append(jnp.transpose(wsub, (1, 0, 2, 3)).reshape(Cout, Cin * 4))
    patches = jnp.stack(patch_list, axis=1)                           # (N, 4, 4*Cin, H*W)
    wmat = jnp.stack(wmat_list, axis=0)                               # (4, Cout, 4*Cin)
    return patches, wmat


def deconv_in_relu(x, w, b):
    """ConvTranspose2d(k=4,s=2,p=1) + InstanceNorm2d(affine=False) + ReLU, fused."""
    N, Cin, H, W = x.shape
    Cout = w.shape[1]
    HW = H * W
    K = 4 * Cin
    patches, wmat = _subpixel_patches(x, w)

    out = pl.pallas_call(
        _deconv_in_relu_kernel,
        out_shape=jax.ShapeDtypeStruct((N, 4, Cout, HW), jnp.float32),
        grid_spec=pltpu.PrefetchScalarGridSpec(
            num_scalar_prefetch=0,
            grid=(N,),
            in_specs=[
                pl.BlockSpec((1, 4, K, HW), lambda n: (n, 0, 0, 0)),
                pl.BlockSpec((4, Cout, K), lambda n: (0, 0, 0)),
                pl.BlockSpec((Cout, 1), lambda n: (0, 0)),
            ],
            out_specs=pl.BlockSpec((1, 4, Cout, HW), lambda n: (n, 0, 0, 0)),
        ),
        compiler_params=pltpu.CompilerParams(dimension_semantics=("parallel",)),
    )(patches.astype(jnp.bfloat16), wmat.astype(jnp.bfloat16),
      b.reshape(Cout, 1).astype(jnp.float32))

    # Interleave the 4 phases back to full resolution: out[:, :, 2q+py, 2r+px].
    out = out.reshape(N, 2, 2, Cout, H, W)       # (n, py, px, oc, q, r)
    out = out.transpose(0, 3, 4, 1, 5, 2)        # (n, oc, q, py, r, px)
    return out.reshape(N, Cout, 2 * H, 2 * W)


def conv2d_k7(x_padded, w, b):
    """Conv2d(kernel=7, stride=1, no extra padding) on an already-padded input."""
    N, Cin, Hp, Wp = x_padded.shape
    OC, _, k, _ = w.shape
    OH, OW = Hp - k + 1, Wp - k + 1
    P = OH * OW
    K = Cin * k * k

    wins = [x_padded[:, :, ky:ky + OH, kx:kx + OW]
            for ky in range(k) for kx in range(k)]
    patches = jnp.stack(wins, axis=2).reshape(N, K, P)   # (N, Cin*k*k, OH*OW)
    wmat = w.reshape(OC, K)

    out = pl.pallas_call(
        _conv_bias_kernel,
        out_shape=jax.ShapeDtypeStruct((N, OC, P), jnp.float32),
        grid_spec=pltpu.PrefetchScalarGridSpec(
            num_scalar_prefetch=0,
            grid=(N,),
            in_specs=[
                pl.BlockSpec((1, K, P), lambda n: (n, 0, 0)),
                pl.BlockSpec((OC, K), lambda n: (0, 0)),
                pl.BlockSpec((OC, 1), lambda n: (0, 0)),
            ],
            out_specs=pl.BlockSpec((1, OC, P), lambda n: (n, 0, 0)),
        ),
        compiler_params=pltpu.CompilerParams(dimension_semantics=("parallel",)),
    )(patches.astype(jnp.bfloat16), wmat.astype(jnp.bfloat16),
      b.reshape(OC, 1).astype(jnp.float32))
    return out.reshape(N, OC, OH, OW)


# ---------------------------------------------------------------------------
# Decoder forward (use_spectral_norm=False, so no spectral-norm reparam)
# ---------------------------------------------------------------------------
def decoder_forward(x, params):
    h = deconv_in_relu(x, params["w1"], params["b1"])                 # ConvT + IN + ReLU
    h = deconv_in_relu(h, params["w2"], params["b2"])                 # ConvT + IN + ReLU
    h = jnp.pad(h, ((0, 0), (0, 0), (3, 3), (3, 3)), mode="reflect")  # ReflectionPad2d(3)
    h = conv2d_k7(h, params["w3"], params["b3"])                      # Conv2d(k=7)
    return h


def init_params(key, in_dim, out_dim, base_dim):
    BC = base_dim
    ks = jax.random.split(key, 6)
    scale = 0.1
    return {
        # ConvTranspose2d(in_dim -> 2*BC, k=4): weight (in, out, k, k)
        "w1": scale * jax.random.normal(ks[0], (in_dim, BC * 2, 4, 4), jnp.float32),
        "b1": scale * jax.random.normal(ks[1], (BC * 2,), jnp.float32),
        # ConvTranspose2d(2*BC -> BC, k=4)
        "w2": scale * jax.random.normal(ks[2], (BC * 2, BC, 4, 4), jnp.float32),
        "b2": scale * jax.random.normal(ks[3], (BC,), jnp.float32),
        # Conv2d(BC -> out_dim, k=7): weight (out, in, k, k)
        "w3": scale * jax.random.normal(ks[4], (out_dim, BC, 7, 7), jnp.float32),
        "b3": scale * jax.random.normal(ks[5], (out_dim,), jnp.float32),
    }


if __name__ == "__main__":
    key = jax.random.PRNGKey(0)
    k_par, k_x = jax.random.split(key)

    in_dim, out_dim, base_dim = 8, 3, 4
    params = init_params(k_par, in_dim, out_dim, base_dim)

    # NCHW input; decoder upsamples 8x8 -> 32x32.
    x = jax.random.normal(k_x, (2, in_dim, 8, 8), jnp.float32)

    out = jax.jit(decoder_forward)(x, params)
    out = jax.block_until_ready(out)

    assert out.shape == (2, out_dim, 32, 32), out.shape
    assert bool(jnp.all(jnp.isfinite(out)))
    print("KERNEL_OK")
</pallas_src>

<mosaic_0001>
module attributes {stable_mosaic.version = 11 : i64} {
  func.func @_deconv_in_relu_kernel(%arg0: i32, %arg1: memref<1x4x32x64xbf16, #tpu.memory_space<vmem>>, %arg2: memref<4x8x32xbf16, #tpu.memory_space<vmem>>, %arg3: memref<8x1xf32, #tpu.memory_space<vmem>>, %arg4: memref<1x4x8x64xf32, #tpu.memory_space<vmem>>) attributes {dimension_semantics = [#tpu.dimension_semantics<parallel>], iteration_bounds = array<i64: 2>, scalar_prefetch = 0 : i64, scratch_operands = 0 : i64, tpu.core_type = #tpu.core_type<tc>, window_params = [{transform_indices = @transform_0, window_bounds = array<i64: 1, 4, 32, 64>}, {pipeline_mode = #tpu.pipeline_mode<synchronous>, transform_indices = @transform_1, window_bounds = array<i64: 4, 8, 32>}, {pipeline_mode = #tpu.pipeline_mode<synchronous>, transform_indices = @transform_2, window_bounds = array<i64: 8, 1>}, {transform_indices = @transform_3, window_bounds = array<i64: 1, 4, 8, 64>}]} {
    %cst = arith.constant 0.000000e+00 : f32
    %0 = vector.broadcast %cst : f32 to vector<8x1xf32>
    %c0 = arith.constant 0 : index
    %c0_0 = arith.constant 0 : index
    %c0_1 = arith.constant 0 : index
    %1 = vector.load %arg2[%c0, %c0_0, %c0_1] : memref<4x8x32xbf16, #tpu.memory_space<vmem>>, vector<1x8x32xbf16>
    %2 = vector.shape_cast %1 : vector<1x8x32xbf16> to vector<8x32xbf16>
    %c0_2 = arith.constant 0 : index
    %c0_3 = arith.constant 0 : index
    %c0_4 = arith.constant 0 : index
    %c0_5 = arith.constant 0 : index
    %3 = vector.load %arg1[%c0_2, %c0_3, %c0_4, %c0_5] : memref<1x4x32x64xbf16, #tpu.memory_space<vmem>>, vector<1x1x32x64xbf16>
    %4 = vector.shape_cast %3 : vector<1x1x32x64xbf16> to vector<32x64xbf16>
    %cst_6 = arith.constant dense<0.000000e+00> : vector<8x64xf32>
    %5 = tpu.matmul %2, %4, %cst_6 {dimension_numbers = #tpu.dot_dimension_numbers<[1], [0], [0], [1], [0, 0, 1, 1], [], []>} : vector<8x32xbf16>, vector<32x64xbf16>, vector<8x64xf32> -> vector<8x64xf32>
    %c0_7 = arith.constant 0 : index
    %c0_8 = arith.constant 0 : index
    %6 = vector.load %arg3[%c0_7, %c0_8] : memref<8x1xf32, #tpu.memory_space<vmem>>, vector<8x1xf32>
    %7 = vector.broadcast %6 : vector<8x1xf32> to vector<8x64xf32>
    %8 = arith.addf %5, %7 : vector<8x64xf32>
    %cst_9 = arith.constant dense<0.000000e+00> : vector<8xf32>
    %9 = vector.multi_reduction <add>, %8, %cst_9 [1] : vector<8x64xf32> to vector<8xf32>
    %10 = vector.shape_cast %9 : vector<8xf32> to vector<8x1xf32>
    %11 = arith.addf %0, %10 : vector<8x1xf32>
    %c1 = arith.constant 1 : index
    %c0_10 = arith.constant 0 : index
    %c0_11 = arith.constant 0 : index
    %12 = vector.load %arg2[%c1, %c0_10, %c0_11] : memref<4x8x32xbf16, #tpu.memory_space<vmem>>, vector<1x8x32xbf16>
    %13 = vector.shape_cast %12 : vector<1x8x32xbf16> to vector<8x32xbf16>
    %c0_12 = arith.constant 0 : index
    %c1_13 = arith.constant 1 : index
    %c0_14 = arith.constant 0 : index
    %c0_15 = arith.constant 0 : index
    %14 = vector.load %arg1[%c0_12, %c1_13, %c0_14, %c0_15] : memref<1x4x32x64xbf16, #tpu.memory_space<vmem>>, vector<1x1x32x64xbf16>
    %15 = vector.shape_cast %14 : vector<1x1x32x64xbf16> to vector<32x64xbf16>
    %cst_16 = arith.constant dense<0.000000e+00> : vector<8x64xf32>
    %16 = tpu.matmul %13, %15, %cst_16 {dimension_numbers = #tpu.dot_dimension_numbers<[1], [0], [0], [1], [0, 0, 1, 1], [], []>} : vector<8x32xbf16>, vector<32x64xbf16>, vector<8x64xf32> -> vector<8x64xf32>
    %c0_17 = arith.constant 0 : index
    %c0_18 = arith.constant 0 : index
    %17 = vector.load %arg3[%c0_17, %c0_18] : memref<8x1xf32, #tpu.memory_space<vmem>>, vector<8x1xf32>
    %18 = vector.broadcast %17 : vector<8x1xf32> to vector<8x64xf32>
    %19 = arith.addf %16, %18 : vector<8x64xf32>
    %cst_19 = arith.constant dense<0.000000e+00> : vector<8xf32>
    %20 = vector.multi_reduction <add>, %19, %cst_19 [1] : vector<8x64xf32> to vector<8xf32>
    %21 = vector.shape_cast %20 : vector<8xf32> to vector<8x1xf32>
    %22 = arith.addf %11, %21 : vector<8x1xf32>
    %c2 = arith.constant 2 : index
    %c0_20 = arith.constant 0 : index
    %c0_21 = arith.constant 0 : index
    %23 = vector.load %arg2[%c2, %c0_20, %c0_21] : memref<4x8x32xbf16, #tpu.memory_space<vmem>>, vector<1x8x32xbf16>
    %24 = vector.shape_cast %23 : vector<1x8x32xbf16> to vector<8x32xbf16>
    %c0_22 = arith.constant 0 : index
    %c2_23 = arith.constant 2 : index
    %c0_24 = arith.constant 0 : index
    %c0_25 = arith.constant 0 : index
    %25 = vector.load %arg1[%c0_22, %c2_23, %c0_24, %c0_25] : memref<1x4x32x64xbf16, #tpu.memory_space<vmem>>, vector<1x1x32x64xbf16>
    %26 = vector.shape_cast %25 : vector<1x1x32x64xbf16> to vector<32x64xbf16>
    %cst_26 = arith.constant dense<0.000000e+00> : vector<8x64xf32>
    %27 = tpu.matmul %24, %26, %cst_26 {dimension_numbers = #tpu.dot_dimension_numbers<[1], [0], [0], [1], [0, 0, 1, 1], [], []>} : vector<8x32xbf16>, vector<32x64xbf16>, vector<8x64xf32> -> vector<8x64xf32>
    %c0_27 = arith.constant 0 : index
    %c0_28 = arith.constant 0 : index
    %28 = vector.load %arg3[%c0_27, %c0_28] : memref<8x1xf32, #tpu.memory_space<vmem>>, vector<8x1xf32>
    %29 = vector.broadcast %28 : vector<8x1xf32> to vector<8x64xf32>
    %30 = arith.addf %27, %29 : vector<8x64xf32>
    %cst_29 = arith.constant dense<0.000000e+00> : vector<8xf32>
    %31 = vector.multi_reduction <add>, %30, %cst_29 [1] : vector<8x64xf32> to vector<8xf32>
    %32 = vector.shape_cast %31 : vector<8xf32> to vector<8x1xf32>
    %33 = arith.addf %22, %32 : vector<8x1xf32>
    %c3 = arith.constant 3 : index
    %c0_30 = arith.constant 0 : index
    %c0_31 = arith.constant 0 : index
    %34 = vector.load %arg2[%c3, %c0_30, %c0_31] : memref<4x8x32xbf16, #tpu.memory_space<vmem>>, vector<1x8x32xbf16>
    %35 = vector.shape_cast %34 : vector<1x8x32xbf16> to vector<8x32xbf16>
    %c0_32 = arith.constant 0 : index
    %c3_33 = arith.constant 3 : index
    %c0_34 = arith.constant 0 : index
    %c0_35 = arith.constant 0 : index
    %36 = vector.load %arg1[%c0_32, %c3_33, %c0_34, %c0_35] : memref<1x4x32x64xbf16, #tpu.memory_space<vmem>>, vector<1x1x32x64xbf16>
    %37 = vector.shape_cast %36 : vector<1x1x32x64xbf16> to vector<32x64xbf16>
    %cst_36 = arith.constant dense<0.000000e+00> : vector<8x64xf32>
    %38 = tpu.matmul %35, %37, %cst_36 {dimension_numbers = #tpu.dot_dimension_numbers<[1], [0], [0], [1], [0, 0, 1, 1], [], []>} : vector<8x32xbf16>, vector<32x64xbf16>, vector<8x64xf32> -> vector<8x64xf32>
    %c0_37 = arith.constant 0 : index
    %c0_38 = arith.constant 0 : index
    %39 = vector.load %arg3[%c0_37, %c0_38] : memref<8x1xf32, #tpu.memory_space<vmem>>, vector<8x1xf32>
    %40 = vector.broadcast %39 : vector<8x1xf32> to vector<8x64xf32>
    %41 = arith.addf %38, %40 : vector<8x64xf32>
    %cst_39 = arith.constant dense<0.000000e+00> : vector<8xf32>
    %42 = vector.multi_reduction <add>, %41, %cst_39 [1] : vector<8x64xf32> to vector<8xf32>
    %43 = vector.shape_cast %42 : vector<8xf32> to vector<8x1xf32>
    %44 = arith.addf %33, %43 : vector<8x1xf32>
    %cst_40 = arith.constant 3.906250e-03 : f32
    %45 = vector.broadcast %cst_40 : f32 to vector<8x1xf32>
    %46 = arith.mulf %44, %45 : vector<8x1xf32>
    %cst_41 = arith.constant 0.000000e+00 : f32
    %47 = vector.broadcast %cst_41 : f32 to vector<8x1xf32>
    %48 = vector.broadcast %46 : vector<8x1xf32> to vector<8x64xf32>
    %49 = arith.subf %8, %48 : vector<8x64xf32>
    %50 = arith.mulf %49, %49 : vector<8x64xf32>
    %cst_42 = arith.constant dense<0.000000e+00> : vector<8xf32>
    %51 = vector.multi_reduction <add>, %50, %cst_42 [1] : vector<8x64xf32> to vector<8xf32>
    %52 = vector.shape_cast %51 : vector<8xf32> to vector<8x1xf32>
    %53 = arith.addf %47, %52 : vector<8x1xf32>
    %54 = vector.broadcast %46 : vector<8x1xf32> to vector<8x64xf32>
    %55 = arith.subf %19, %54 : vector<8x64xf32>
    %56 = arith.mulf %55, %55 : vector<8x64xf32>
    %cst_43 = arith.constant dense<0.000000e+00> : vector<8xf32>
    %57 = vector.multi_reduction <add>, %56, %cst_43 [1] : vector<8x64xf32> to vector<8xf32>
    %58 = vector.shape_cast %57 : vector<8xf32> to vector<8x1xf32>
    %59 = arith.addf %53, %58 : vector<8x1xf32>
    %60 = vector.broadcast %46 : vector<8x1xf32> to vector<8x64xf32>
    %61 = arith.subf %30, %60 : vector<8x64xf32>
    %62 = arith.mulf %61, %61 : vector<8x64xf32>
    %cst_44 = arith.constant dense<0.000000e+00> : vector<8xf32>
    %63 = vector.multi_reduction <add>, %62, %cst_44 [1] : vector<8x64xf32> to vector<8xf32>
    %64 = vector.shape_cast %63 : vector<8xf32> to vector<8x1xf32>
    %65 = arith.addf %59, %64 : vector<8x1xf32>
    %66 = vector.broadcast %46 : vector<8x1xf32> to vector<8x64xf32>
    %67 = arith.subf %41, %66 : vector<8x64xf32>
    %68 = arith.mulf %67, %67 : vector<8x64xf32>
    %cst_45 = arith.constant dense<0.000000e+00> : vector<8xf32>
    %69 = vector.multi_reduction <add>, %68, %cst_45 [1] : vector<8x64xf32> to vector<8xf32>
    %70 = vector.shape_cast %69 : vector<8xf32> to vector<8x1xf32>
    %71 = arith.addf %65, %70 : vector<8x1xf32>
    %cst_46 = arith.constant 3.906250e-03 : f32
    %72 = vector.broadcast %cst_46 : f32 to vector<8x1xf32>
    %73 = arith.mulf %71, %72 : vector<8x1xf32>
    %cst_47 = arith.constant 9.99999974E-6 : f32
    %74 = vector.broadcast %cst_47 : f32 to vector<8x1xf32>
    %75 = arith.addf %73, %74 : vector<8x1xf32>
    %76 = math.rsqrt %75 : vector<8x1xf32>
    %77 = vector.broadcast %46 : vector<8x1xf32> to vector<8x64xf32>
    %78 = arith.subf %8, %77 : vector<8x64xf32>
    %79 = vector.broadcast %76 : vector<8x1xf32> to vector<8x64xf32>
    %80 = arith.mulf %78, %79 : vector<8x64xf32>
    %cst_48 = arith.constant 0.000000e+00 : f32
    %81 = vector.broadcast %cst_48 : f32 to vector<8x64xf32>
    %82 = arith.maximumf %80, %81 : vector<8x64xf32>
    %c0_49 = arith.constant 0 : index
    %c0_50 = arith.constant 0 : index
    %c0_51 = arith.constant 0 : index
    %c0_52 = arith.constant 0 : index
    %83 = vector.load %arg4[%c0_49, %c0_50, %c0_51, %c0_52] : memref<1x4x8x64xf32, #tpu.memory_space<vmem>>, vector<1x1x8x64xf32>
    %84 = vector.shape_cast %83 : vector<1x1x8x64xf32> to vector<8x64xf32>
    %85 = vector.shape_cast %82 : vector<8x64xf32> to vector<1x1x8x64xf32>
    tpu.vector_store %arg4[%c0_49, %c0_50, %c0_51, %c0_52], %85 {strides = array<i32>} : memref<1x4x8x64xf32, #tpu.memory_space<vmem>>, vector<1x1x8x64xf32>,
    %86 = vector.broadcast %46 : vector<8x1xf32> to vector<8x64xf32>
    %87 = arith.subf %19, %86 : vector<8x64xf32>
    %88 = vector.broadcast %76 : vector<8x1xf32> to vector<8x64xf32>
    %89 = arith.mulf %87, %88 : vector<8x64xf32>
    %cst_53 = arith.constant 0.000000e+00 : f32
    %90 = vector.broadcast %cst_53 : f32 to vector<8x64xf32>
    %91 = arith.maximumf %89, %90 : vector<8x64xf32>
    %c0_54 = arith.constant 0 : index
    %c1_55 = arith.constant 1 : index
    %c0_56 = arith.constant 0 : index
    %c0_57 = arith.constant 0 : index
    %92 = vector.load %arg4[%c0_54, %c1_55, %c0_56, %c0_57] : memref<1x4x8x64xf32, #tpu.memory_space<vmem>>, vector<1x1x8x64xf32>
    %93 = vector.shape_cast %92 : vector<1x1x8x64xf32> to vector<8x64xf32>
    %94 = vector.shape_cast %91 : vector<8x64xf32> to vector<1x1x8x64xf32>
    tpu.vector_store %arg4[%c0_54, %c1_55, %c0_56, %c0_57], %94 {strides = array<i32>} : memref<1x4x8x64xf32, #tpu.memory_space<vmem>>, vector<1x1x8x64xf32>,
    %95 = vector.broadcast %46 : vector<8x1xf32> to vector<8x64xf32>
    %96 = arith.subf %30, %95 : vector<8x64xf32>
    %97 = vector.broadcast %76 : vector<8x1xf32> to vector<8x64xf32>
    %98 = arith.mulf %96, %97 : vector<8x64xf32>
    %cst_58 = arith.constant 0.000000e+00 : f32
    %99 = vector.broadcast %cst_58 : f32 to vector<8x64xf32>
    %100 = arith.maximumf %98, %99 : vector<8x64xf32>
    %c0_59 = arith.constant 0 : index
    %c2_60 = arith.constant 2 : index
    %c0_61 = arith.constant 0 : index
    %c0_62 = arith.constant 0 : index
    %101 = vector.load %arg4[%c0_59, %c2_60, %c0_61, %c0_62] : memref<1x4x8x64xf32, #tpu.memory_space<vmem>>, vector<1x1x8x64xf32>
    %102 = vector.shape_cast %101 : vector<1x1x8x64xf32> to vector<8x64xf32>
    %103 = vector.shape_cast %100 : vector<8x64xf32> to vector<1x1x8x64xf32>
    tpu.vector_store %arg4[%c0_59, %c2_60, %c0_61, %c0_62], %103 {strides = array<i32>} : memref<1x4x8x64xf32, #tpu.memory_space<vmem>>, vector<1x1x8x64xf32>,
    %104 = vector.broadcast %46 : vector<8x1xf32> to vector<8x64xf32>
    %105 = arith.subf %41, %104 : vector<8x64xf32>
    %106 = vector.broadcast %76 : vector<8x1xf32> to vector<8x64xf32>
    %107 = arith.mulf %105, %106 : vector<8x64xf32>
    %cst_63 = arith.constant 0.000000e+00 : f32
    %108 = vector.broadcast %cst_63 : f32 to vector<8x64xf32>
    %109 = arith.maximumf %107, %108 : vector<8x64xf32>
    %c0_64 = arith.constant 0 : index
    %c3_65 = arith.constant 3 : index
    %c0_66 = arith.constant 0 : index
    %c0_67 = arith.constant 0 : index
    %110 = vector.load %arg4[%c0_64, %c3_65, %c0_66, %c0_67] : memref<1x4x8x64xf32, #tpu.memory_space<vmem>>, vector<1x1x8x64xf32>
    %111 = vector.shape_cast %110 : vector<1x1x8x64xf32> to vector<8x64xf32>
    %112 = vector.shape_cast %109 : vector<8x64xf32> to vector<1x1x8x64xf32>
    tpu.vector_store %arg4[%c0_64, %c3_65, %c0_66, %c0_67], %112 {strides = array<i32>} : memref<1x4x8x64xf32, #tpu.memory_space<vmem>>, vector<1x1x8x64xf32>,
    return
  }
  func.func @transform_0(%arg0: i32) -> (i32, i32, i32, i32) {
    %c0_i32 = arith.constant 0 : i32
    %c0_i32_0 = arith.constant 0 : i32
    %c0_i32_1 = arith.constant 0 : i32
    %c0_i32_2 = arith.constant 0 : i32
    return %arg0, %c0_i32, %c0_i32_0, %c0_i32_1 : i32, i32, i32, i32
  }
  func.func @transform_1(%arg0: i32) -> (i32, i32, i32) {
    %c0_i32 = arith.constant 0 : i32
    %c0_i32_0 = arith.constant 0 : i32
    %c0_i32_1 = arith.constant 0 : i32
    %c0_i32_2 = arith.constant 0 : i32
    return %c0_i32, %c0_i32_0, %c0_i32_1 : i32, i32, i32
  }
  func.func @transform_2(%arg0: i32) -> (i32, i32) {
    %c0_i32 = arith.constant 0 : i32
    %c0_i32_0 = arith.constant 0 : i32
    %c0_i32_1 = arith.constant 0 : i32
    return %c0_i32, %c0_i32_0 : i32, i32
  }
  func.func @transform_3(%arg0: i32) -> (i32, i32, i32, i32) {
    %c0_i32 = arith.constant 0 : i32
    %c0_i32_0 = arith.constant 0 : i32
    %c0_i32_1 = arith.constant 0 : i32
    %c0_i32_2 = arith.constant 0 : i32
    return %arg0, %c0_i32, %c0_i32_0, %c0_i32_1 : i32, i32, i32, i32
  }
}

module attributes {stable_mosaic.version = 11 : i64} {
  func.func @_deconv_in_relu_kernel(%arg0: i32, %arg1: memref<1x4x32x256xbf16, #tpu.memory_space<vmem>>, %arg2: memref<4x4x32xbf16, #tpu.memory_space<vmem>>, %arg3: memref<4x1xf32, #tpu.memory_space<vmem>>, %arg4: memref<1x4x4x256xf32, #tpu.memory_space<vmem>>) attributes {dimension_semantics = [#tpu.dimension_semantics<parallel>], iteration_bounds = array<i64: 2>, scalar_prefetch = 0 : i64, scratch_operands = 0 : i64, tpu.core_type = #tpu.core_type<tc>, window_params = [{transform_indices = @transform_0, window_bounds = array<i64: 1, 4, 32, 256>}, {pipeline_mode = #tpu.pipeline_mode<synchronous>, transform_indices = @transform_1, window_bounds = array<i64: 4, 4, 32>}, {pipeline_mode = #tpu.pipeline_mode<synchronous>, transform_indices = @transform_2, window_bounds = array<i64: 4, 1>}, {transform_indices = @transform_3, window_bounds = array<i64: 1, 4, 4, 256>}]} {
    %cst = arith.constant 0.000000e+00 : f32
    %0 = vector.broadcast %cst : f32 to vector<4x1xf32>
    %c0 = arith.constant 0 : index
    %c0_0 = arith.constant 0 : index
    %c0_1 = arith.constant 0 : index
    %1 = vector.load %arg2[%c0, %c0_0, %c0_1] : memref<4x4x32xbf16, #tpu.memory_space<vmem>>, vector<1x4x32xbf16>
    %2 = vector.shape_cast %1 : vector<1x4x32xbf16> to vector<4x32xbf16>
    %c0_2 = arith.constant 0 : index
    %c0_3 = arith.constant 0 : index
    %c0_4 = arith.constant 0 : index
    %c0_5 = arith.constant 0 : index
    %3 = vector.load %arg1[%c0_2, %c0_3, %c0_4, %c0_5] : memref<1x4x32x256xbf16, #tpu.memory_space<vmem>>, vector<1x1x32x256xbf16>
    %4 = vector.shape_cast %3 : vector<1x1x32x256xbf16> to vector<32x256xbf16>
    %cst_6 = arith.constant dense<0.000000e+00> : vector<4x256xf32>
    %5 = tpu.matmul %2, %4, %cst_6 {dimension_numbers = #tpu.dot_dimension_numbers<[1], [0], [0], [1], [0, 0, 1, 1], [], []>} : vector<4x32xbf16>, vector<32x256xbf16>, vector<4x256xf32> -> vector<4x256xf32>
    %c0_7 = arith.constant 0 : index
    %c0_8 = arith.constant 0 : index
    %6 = vector.load %arg3[%c0_7, %c0_8] : memref<4x1xf32, #tpu.memory_space<vmem>>, vector<4x1xf32>
    %7 = vector.broadcast %6 : vector<4x1xf32> to vector<4x256xf32>
    %8 = arith.addf %5, %7 : vector<4x256xf32>
    %cst_9 = arith.constant dense<0.000000e+00> : vector<4xf32>
    %9 = vector.multi_reduction <add>, %8, %cst_9 [1] : vector<4x256xf32> to vector<4xf32>
    %10 = vector.shape_cast %9 : vector<4xf32> to vector<4x1xf32>
    %11 = arith.addf %0, %10 : vector<4x1xf32>
    %c1 = arith.constant 1 : index
    %c0_10 = arith.constant 0 : index
    %c0_11 = arith.constant 0 : index
    %12 = vector.load %arg2[%c1, %c0_10, %c0_11] : memref<4x4x32xbf16, #tpu.memory_space<vmem>>, vector<1x4x32xbf16>
    %13 = vector.shape_cast %12 : vector<1x4x32xbf16> to vector<4x32xbf16>
    %c0_12 = arith.constant 0 : index
    %c1_13 = arith.constant 1 : index
    %c0_14 = arith.constant 0 : index
    %c0_15 = arith.constant 0 : index
    %14 = vector.load %arg1[%c0_12, %c1_13, %c0_14, %c0_15] : memref<1x4x32x256xbf16, #tpu.memory_space<vmem>>, vector<1x1x32x256xbf16>
    %15 = vector.shape_cast %14 : vector<1x1x32x256xbf16> to vector<32x256xbf16>
    %cst_16 = arith.constant dense<0.000000e+00> : vector<4x256xf32>
    %16 = tpu.matmul %13, %15, %cst_16 {dimension_numbers = #tpu.dot_dimension_numbers<[1], [0], [0], [1], [0, 0, 1, 1], [], []>} : vector<4x32xbf16>, vector<32x256xbf16>, vector<4x256xf32> -> vector<4x256xf32>
    %c0_17 = arith.constant 0 : index
    %c0_18 = arith.constant 0 : index
    %17 = vector.load %arg3[%c0_17, %c0_18] : memref<4x1xf32, #tpu.memory_space<vmem>>, vector<4x1xf32>
    %18 = vector.broadcast %17 : vector<4x1xf32> to vector<4x256xf32>
    %19 = arith.addf %16, %18 : vector<4x256xf32>
    %cst_19 = arith.constant dense<0.000000e+00> : vector<4xf32>
    %20 = vector.multi_reduction <add>, %19, %cst_19 [1] : vector<4x256xf32> to vector<4xf32>
    %21 = vector.shape_cast %20 : vector<4xf32> to vector<4x1xf32>
    %22 = arith.addf %11, %21 : vector<4x1xf32>
    %c2 = arith.constant 2 : index
    %c0_20 = arith.constant 0 : index
    %c0_21 = arith.constant 0 : index
    %23 = vector.load %arg2[%c2, %c0_20, %c0_21] : memref<4x4x32xbf16, #tpu.memory_space<vmem>>, vector<1x4x32xbf16>
    %24 = vector.shape_cast %23 : vector<1x4x32xbf16> to vector<4x32xbf16>
    %c0_22 = arith.constant 0 : index
    %c2_23 = arith.constant 2 : index
    %c0_24 = arith.constant 0 : index
    %c0_25 = arith.constant 0 : index
    %25 = vector.load %arg1[%c0_22, %c2_23, %c0_24, %c0_25] : memref<1x4x32x256xbf16, #tpu.memory_space<vmem>>, vector<1x1x32x256xbf16>
    %26 = vector.shape_cast %25 : vector<1x1x32x256xbf16> to vector<32x256xbf16>
    %cst_26 = arith.constant dense<0.000000e+00> : vector<4x256xf32>
    %27 = tpu.matmul %24, %26, %cst_26 {dimension_numbers = #tpu.dot_dimension_numbers<[1], [0], [0], [1], [0, 0, 1, 1], [], []>} : vector<4x32xbf16>, vector<32x256xbf16>, vector<4x256xf32> -> vector<4x256xf32>
    %c0_27 = arith.constant 0 : index
    %c0_28 = arith.constant 0 : index
    %28 = vector.load %arg3[%c0_27, %c0_28] : memref<4x1xf32, #tpu.memory_space<vmem>>, vector<4x1xf32>
    %29 = vector.broadcast %28 : vector<4x1xf32> to vector<4x256xf32>
    %30 = arith.addf %27, %29 : vector<4x256xf32>
    %cst_29 = arith.constant dense<0.000000e+00> : vector<4xf32>
    %31 = vector.multi_reduction <add>, %30, %cst_29 [1] : vector<4x256xf32> to vector<4xf32>
    %32 = vector.shape_cast %31 : vector<4xf32> to vector<4x1xf32>
    %33 = arith.addf %22, %32 : vector<4x1xf32>
    %c3 = arith.constant 3 : index
    %c0_30 = arith.constant 0 : index
    %c0_31 = arith.constant 0 : index
    %34 = vector.load %arg2[%c3, %c0_30, %c0_31] : memref<4x4x32xbf16, #tpu.memory_space<vmem>>, vector<1x4x32xbf16>
    %35 = vector.shape_cast %34 : vector<1x4x32xbf16> to vector<4x32xbf16>
    %c0_32 = arith.constant 0 : index
    %c3_33 = arith.constant 3 : index
    %c0_34 = arith.constant 0 : index
    %c0_35 = arith.constant 0 : index
    %36 = vector.load %arg1[%c0_32, %c3_33, %c0_34, %c0_35] : memref<1x4x32x256xbf16, #tpu.memory_space<vmem>>, vector<1x1x32x256xbf16>
    %37 = vector.shape_cast %36 : vector<1x1x32x256xbf16> to vector<32x256xbf16>
    %cst_36 = arith.constant dense<0.000000e+00> : vector<4x256xf32>
    %38 = tpu.matmul %35, %37, %cst_36 {dimension_numbers = #tpu.dot_dimension_numbers<[1], [0], [0], [1], [0, 0, 1, 1], [], []>} : vector<4x32xbf16>, vector<32x256xbf16>, vector<4x256xf32> -> vector<4x256xf32>
    %c0_37 = arith.constant 0 : index
    %c0_38 = arith.constant 0 : index
    %39 = vector.load %arg3[%c0_37, %c0_38] : memref<4x1xf32, #tpu.memory_space<vmem>>, vector<4x1xf32>
    %40 = vector.broadcast %39 : vector<4x1xf32> to vector<4x256xf32>
    %41 = arith.addf %38, %40 : vector<4x256xf32>
    %cst_39 = arith.constant dense<0.000000e+00> : vector<4xf32>
    %42 = vector.multi_reduction <add>, %41, %cst_39 [1] : vector<4x256xf32> to vector<4xf32>
    %43 = vector.shape_cast %42 : vector<4xf32> to vector<4x1xf32>
    %44 = arith.addf %33, %43 : vector<4x1xf32>
    %cst_40 = arith.constant 9.765625E-4 : f32
    %45 = vector.broadcast %cst_40 : f32 to vector<4x1xf32>
    %46 = arith.mulf %44, %45 : vector<4x1xf32>
    %cst_41 = arith.constant 0.000000e+00 : f32
    %47 = vector.broadcast %cst_41 : f32 to vector<4x1xf32>
    %48 = vector.broadcast %46 : vector<4x1xf32> to vector<4x256xf32>
    %49 = arith.subf %8, %48 : vector<4x256xf32>
    %50 = arith.mulf %49, %49 : vector<4x256xf32>
    %cst_42 = arith.constant dense<0.000000e+00> : vector<4xf32>
    %51 = vector.multi_reduction <add>, %50, %cst_42 [1] : vector<4x256xf32> to vector<4xf32>
    %52 = vector.shape_cast %51 : vector<4xf32> to vector<4x1xf32>
    %53 = arith.addf %47, %52 : vector<4x1xf32>
    %54 = vector.broadcast %46 : vector<4x1xf32> to vector<4x256xf32>
    %55 = arith.subf %19, %54 : vector<4x256xf32>
    %56 = arith.mulf %55, %55 : vector<4x256xf32>
    %cst_43 = arith.constant dense<0.000000e+00> : vector<4xf32>
    %57 = vector.multi_reduction <add>, %56, %cst_43 [1] : vector<4x256xf32> to vector<4xf32>
    %58 = vector.shape_cast %57 : vector<4xf32> to vector<4x1xf32>
    %59 = arith.addf %53, %58 : vector<4x1xf32>
    %60 = vector.broadcast %46 : vector<4x1xf32> to vector<4x256xf32>
    %61 = arith.subf %30, %60 : vector<4x256xf32>
    %62 = arith.mulf %61, %61 : vector<4x256xf32>
    %cst_44 = arith.constant dense<0.000000e+00> : vector<4xf32>
    %63 = vector.multi_reduction <add>, %62, %cst_44 [1] : vector<4x256xf32> to vector<4xf32>
    %64 = vector.shape_cast %63 : vector<4xf32> to vector<4x1xf32>
    %65 = arith.addf %59, %64 : vector<4x1xf32>
    %66 = vector.broadcast %46 : vector<4x1xf32> to vector<4x256xf32>
    %67 = arith.subf %41, %66 : vector<4x256xf32>
    %68 = arith.mulf %67, %67 : vector<4x256xf32>
    %cst_45 = arith.constant dense<0.000000e+00> : vector<4xf32>
    %69 = vector.multi_reduction <add>, %68, %cst_45 [1] : vector<4x256xf32> to vector<4xf32>
    %70 = vector.shape_cast %69 : vector<4xf32> to vector<4x1xf32>
    %71 = arith.addf %65, %70 : vector<4x1xf32>
    %cst_46 = arith.constant 9.765625E-4 : f32
    %72 = vector.broadcast %cst_46 : f32 to vector<4x1xf32>
    %73 = arith.mulf %71, %72 : vector<4x1xf32>
    %cst_47 = arith.constant 9.99999974E-6 : f32
    %74 = vector.broadcast %cst_47 : f32 to vector<4x1xf32>
    %75 = arith.addf %73, %74 : vector<4x1xf32>
    %76 = math.rsqrt %75 : vector<4x1xf32>
    %77 = vector.broadcast %46 : vector<4x1xf32> to vector<4x256xf32>
    %78 = arith.subf %8, %77 : vector<4x256xf32>
    %79 = vector.broadcast %76 : vector<4x1xf32> to vector<4x256xf32>
    %80 = arith.mulf %78, %79 : vector<4x256xf32>
    %cst_48 = arith.constant 0.000000e+00 : f32
    %81 = vector.broadcast %cst_48 : f32 to vector<4x256xf32>
    %82 = arith.maximumf %80, %81 : vector<4x256xf32>
    %c0_49 = arith.constant 0 : index
    %c0_50 = arith.constant 0 : index
    %c0_51 = arith.constant 0 : index
    %c0_52 = arith.constant 0 : index
    %83 = vector.load %arg4[%c0_49, %c0_50, %c0_51, %c0_52] : memref<1x4x4x256xf32, #tpu.memory_space<vmem>>, vector<1x1x4x256xf32>
    %84 = vector.shape_cast %83 : vector<1x1x4x256xf32> to vector<4x256xf32>
    %85 = vector.shape_cast %82 : vector<4x256xf32> to vector<1x1x4x256xf32>
    tpu.vector_store %arg4[%c0_49, %c0_50, %c0_51, %c0_52], %85 {strides = array<i32>} : memref<1x4x4x256xf32, #tpu.memory_space<vmem>>, vector<1x1x4x256xf32>,
    %86 = vector.broadcast %46 : vector<4x1xf32> to vector<4x256xf32>
    %87 = arith.subf %19, %86 : vector<4x256xf32>
    %88 = vector.broadcast %76 : vector<4x1xf32> to vector<4x256xf32>
    %89 = arith.mulf %87, %88 : vector<4x256xf32>
    %cst_53 = arith.constant 0.000000e+00 : f32
    %90 = vector.broadcast %cst_53 : f32 to vector<4x256xf32>
    %91 = arith.maximumf %89, %90 : vector<4x256xf32>
    %c0_54 = arith.constant 0 : index
    %c1_55 = arith.constant 1 : index
    %c0_56 = arith.constant 0 : index
    %c0_57 = arith.constant 0 : index
    %92 = vector.load %arg4[%c0_54, %c1_55, %c0_56, %c0_57] : memref<1x4x4x256xf32, #tpu.memory_space<vmem>>, vector<1x1x4x256xf32>
    %93 = vector.shape_cast %92 : vector<1x1x4x256xf32> to vector<4x256xf32>
    %94 = vector.shape_cast %91 : vector<4x256xf32> to vector<1x1x4x256xf32>
    tpu.vector_store %arg4[%c0_54, %c1_55, %c0_56, %c0_57], %94 {strides = array<i32>} : memref<1x4x4x256xf32, #tpu.memory_space<vmem>>, vector<1x1x4x256xf32>,
    %95 = vector.broadcast %46 : vector<4x1xf32> to vector<4x256xf32>
    %96 = arith.subf %30, %95 : vector<4x256xf32>
    %97 = vector.broadcast %76 : vector<4x1xf32> to vector<4x256xf32>
    %98 = arith.mulf %96, %97 : vector<4x256xf32>
    %cst_58 = arith.constant 0.000000e+00 : f32
    %99 = vector.broadcast %cst_58 : f32 to vector<4x256xf32>
    %100 = arith.maximumf %98, %99 : vector<4x256xf32>
    %c0_59 = arith.constant 0 : index
    %c2_60 = arith.constant 2 : index
    %c0_61 = arith.constant 0 : index
    %c0_62 = arith.constant 0 : index
    %101 = vector.load %arg4[%c0_59, %c2_60, %c0_61, %c0_62] : memref<1x4x4x256xf32, #tpu.memory_space<vmem>>, vector<1x1x4x256xf32>
    %102 = vector.shape_cast %101 : vector<1x1x4x256xf32> to vector<4x256xf32>
    %103 = vector.shape_cast %100 : vector<4x256xf32> to vector<1x1x4x256xf32>
    tpu.vector_store %arg4[%c0_59, %c2_60, %c0_61, %c0_62], %103 {strides = array<i32>} : memref<1x4x4x256xf32, #tpu.memory_space<vmem>>, vector<1x1x4x256xf32>,
    %104 = vector.broadcast %46 : vector<4x1xf32> to vector<4x256xf32>
    %105 = arith.subf %41, %104 : vector<4x256xf32>
    %106 = vector.broadcast %76 : vector<4x1xf32> to vector<4x256xf32>
    %107 = arith.mulf %105, %106 : vector<4x256xf32>
    %cst_63 = arith.constant 0.000000e+00 : f32
    %108 = vector.broadcast %cst_63 : f32 to vector<4x256xf32>
    %109 = arith.maximumf %107, %108 : vector<4x256xf32>
    %c0_64 = arith.constant 0 : index
    %c3_65 = arith.constant 3 : index
    %c0_66 = arith.constant 0 : index
    %c0_67 = arith.constant 0 : index
    %110 = vector.load %arg4[%c0_64, %c3_65, %c0_66, %c0_67] : memref<1x4x4x256xf32, #tpu.memory_space<vmem>>, vector<1x1x4x256xf32>
    %111 = vector.shape_cast %110 : vector<1x1x4x256xf32> to vector<4x256xf32>
    %112 = vector.shape_cast %109 : vector<4x256xf32> to vector<1x1x4x256xf32>
    tpu.vector_store %arg4[%c0_64, %c3_65, %c0_66, %c0_67], %112 {strides = array<i32>} : memref<1x4x4x256xf32, #tpu.memory_space<vmem>>, vector<1x1x4x256xf32>,
    return
  }
  func.func @transform_0(%arg0: i32) -> (i32, i32, i32, i32) {
    %c0_i32 = arith.constant 0 : i32
    %c0_i32_0 = arith.constant 0 : i32
    %c0_i32_1 = arith.constant 0 : i32
    %c0_i32_2 = arith.constant 0 : i32
    return %arg0, %c0_i32, %c0_i32_0, %c0_i32_1 : i32, i32, i32, i32
  }
  func.func @transform_1(%arg0: i32) -> (i32, i32, i32) {
    %c0_i32 = arith.constant 0 : i32
    %c0_i32_0 = arith.constant 0 : i32
    %c0_i32_1 = arith.constant 0 : i32
    %c0_i32_2 = arith.constant 0 : i32
    return %c0_i32, %c0_i32_0, %c0_i32_1 : i32, i32, i32
  }
  func.func @transform_2(%arg0: i32) -> (i32, i32) {
    %c0_i32 = arith.constant 0 : i32
    %c0_i32_0 = arith.constant 0 : i32
    %c0_i32_1 = arith.constant 0 : i32
    return %c0_i32, %c0_i32_0 : i32, i32
  }
  func.func @transform_3(%arg0: i32) -> (i32, i32, i32, i32) {
    %c0_i32 = arith.constant 0 : i32
    %c0_i32_0 = arith.constant 0 : i32
    %c0_i32_1 = arith.constant 0 : i32
    %c0_i32_2 = arith.constant 0 : i32
    return %arg0, %c0_i32, %c0_i32_0, %c0_i32_1 : i32, i32, i32, i32
  }
}

module attributes {stable_mosaic.version = 11 : i64} {
  func.func @_conv_bias_kernel(%arg0: i32, %arg1: memref<1x196x1024xbf16, #tpu.memory_space<vmem>>, %arg2: memref<3x196xbf16, #tpu.memory_space<vmem>>, %arg3: memref<3x1xf32, #tpu.memory_space<vmem>>, %arg4: memref<1x3x1024xf32, #tpu.memory_space<vmem>>) attributes {dimension_semantics = [#tpu.dimension_semantics<parallel>], iteration_bounds = array<i64: 2>, scalar_prefetch = 0 : i64, scratch_operands = 0 : i64, tpu.core_type = #tpu.core_type<tc>, window_params = [{transform_indices = @transform_0, window_bounds = array<i64: 1, 196, 1024>}, {pipeline_mode = #tpu.pipeline_mode<synchronous>, transform_indices = @transform_1, window_bounds = array<i64: 3, 196>}, {pipeline_mode = #tpu.pipeline_mode<synchronous>, transform_indices = @transform_2, window_bounds = array<i64: 3, 1>}, {transform_indices = @transform_3, window_bounds = array<i64: 1, 3, 1024>}]} {
    %c0 = arith.constant 0 : index
    %c0_0 = arith.constant 0 : index
    %0 = vector.load %arg2[%c0, %c0_0] : memref<3x196xbf16, #tpu.memory_space<vmem>>, vector<3x196xbf16>
    %c0_1 = arith.constant 0 : index
    %c0_2 = arith.constant 0 : index
    %c0_3 = arith.constant 0 : index
    %1 = vector.load %arg1[%c0_1, %c0_2, %c0_3] : memref<1x196x1024xbf16, #tpu.memory_space<vmem>>, vector<1x196x1024xbf16>
    %2 = vector.shape_cast %1 : vector<1x196x1024xbf16> to vector<196x1024xbf16>
    %cst = arith.constant dense<0.000000e+00> : vector<3x1024xf32>
    %3 = tpu.matmul %0, %2, %cst {dimension_numbers = #tpu.dot_dimension_numbers<[1], [0], [0], [1], [0, 0, 1, 1], [], []>} : vector<3x196xbf16>, vector<196x1024xbf16>, vector<3x1024xf32> -> vector<3x1024xf32>
    %c0_4 = arith.constant 0 : index
    %c0_5 = arith.constant 0 : index
    %4 = vector.load %arg3[%c0_4, %c0_5] : memref<3x1xf32, #tpu.memory_space<vmem>>, vector<3x1xf32>
    %5 = vector.broadcast %4 : vector<3x1xf32> to vector<3x1024xf32>
    %6 = arith.addf %3, %5 : vector<3x1024xf32>
    %c0_6 = arith.constant 0 : index
    %c0_7 = arith.constant 0 : index
    %c0_8 = arith.constant 0 : index
    %7 = vector.load %arg4[%c0_6, %c0_7, %c0_8] : memref<1x3x1024xf32, #tpu.memory_space<vmem>>, vector<1x3x1024xf32>
    %8 = vector.shape_cast %7 : vector<1x3x1024xf32> to vector<3x1024xf32>
    %9 = vector.shape_cast %6 : vector<3x1024xf32> to vector<1x3x1024xf32>
    tpu.vector_store %arg4[%c0_6, %c0_7, %c0_8], %9 {strides = array<i32>} : memref<1x3x1024xf32, #tpu.memory_space<vmem>>, vector<1x3x1024xf32>,
    return
  }
  func.func @transform_0(%arg0: i32) -> (i32, i32, i32) {
    %c0_i32 = arith.constant 0 : i32
    %c0_i32_0 = arith.constant 0 : i32
    %c0_i32_1 = arith.constant 0 : i32
    return %arg0, %c0_i32, %c0_i32_0 : i32, i32, i32
  }
  func.func @transform_1(%arg0: i32) -> (i32, i32) {
    %c0_i32 = arith.constant 0 : i32
    %c0_i32_0 = arith.constant 0 : i32
    %c0_i32_1 = arith.constant 0 : i32
    return %c0_i32, %c0_i32_0 : i32, i32
  }
  func.func @transform_2(%arg0: i32) -> (i32, i32) {
    %c0_i32 = arith.constant 0 : i32
    %c0_i32_0 = arith.constant 0 : i32
    %c0_i32_1 = arith.constant 0 : i32
    return %c0_i32, %c0_i32_0 : i32, i32
  }
  func.func @transform_3(%arg0: i32) -> (i32, i32, i32) {
    %c0_i32 = arith.constant 0 : i32
    %c0_i32_0 = arith.constant 0 : i32
    %c0_i32_1 = arith.constant 0 : i32
    return %arg0, %c0_i32, %c0_i32_0 : i32, i32, i32
  }
}

</mosaic_0001>

<llo_original>
// kernel: decoder_forward.3
$region0: #{decoder_forward.3}
  #allocation0 [shape = 'u32[]', space=smem, size = 0x4, offset = 0x4, fixed_abs, tag = 'smem constant byte address 0x4 - core index']
  #allocation1 [shape = 'u32[144,128]{1,0:T(1,128)}', space=vmem, size = 0x12000, scoped, tag = 'internal scratch']
  %s0 = inlined_call_operand.vmem [shape: bf16[2,4,32,64], index: 0, kind: input, shape index: {}]
  %s1 = inlined_call_operand.vmem [shape: bf16[4,8,32], index: 1, kind: input, shape index: {}]
  %s2 = inlined_call_operand.vmem [shape: f32[8,1], index: 2, kind: input, shape index: {}]
  %s3 = inlined_call_operand.vmem [shape: f32[2,4,8,64], index: 3, kind: output, shape index: {}]
  %s4 = sld [smem:[#allocation0]]
  $region45: #{decoder_forward.3} parent=0
    _
  %s6 = ssub.s32 1, %s4
  %s7 = scalar_select 0, %s6, %s4
  loop: start=0, step=1, limit=4
  $region2: #{decoder_forward.3} parent=0 // loop_pre_header
    _
  $region3: #{decoder_forward.3} parent=0 // loop_header
    %s9 = sphi 0, %s13
    %p10 = scmp.ge.s32.totalorder %s9, 4
    %s19 = sphi 0, %s21
    %s22 = sphi 0, %s19
    %s23 = sphi 0, %s22
    %s39 = sphi 0, %s23
    %s43 = sphi 0, %s43
    %s45 = sphi 0, %s43
    %s46 = sphi 0, %s45
    %s60 = sphi 0, %s46
    %s64 = sphi 0, %s64
    %s66 = sphi 0, %s64
    %s67 = sphi 0, %s66
    %s81 = sphi 0, %s67
    %s87 = sphi 0, %s89
    %s90 = sphi 0, %s87
    %s91 = sphi 0, %s90
    %s107 = sphi 0, %s91
  $region4: #{decoder_forward.3} parent=0 // loop_header_branch
    %12 = sbr.rel (%p10) target = $region8
  $region5: #{decoder_forward.3} parent=0 // loop_body
    %s14 = ssub.s32 %s9, 1
    %s15 = ssub.s32 %s9, 2
    %s16 = sadd.s32 %s9, 1
    %s17 = ssub.s32 %s9, %s16
    %p18 = scmp.eq.s32.totalorder %s17, 0
    %s20 = sadd.s32 %s19, 1
    %s21 = scalar_select %p18, %s19, %s20
    %p24 = pneg %p18
    %p25 = scmp.eq.s32.totalorder %s9, 1
    %p26 = por %p24, %p25
    %p27 = scmp.ne.s32.totalorder %s19, %s22
    %p28 = scmp.eq.s32.totalorder %s9, 0
    %p29 = por %p27, %p28
    %p30 = scmp.ne.s32.totalorder %s19, %s22
    %p31 = scmp.eq.s32.totalorder %s14, 1
    %p32 = por %p30, %p31
    %p33 = scmp.ne.s32.totalorder %s22, %s23
    %p34 = scmp.eq.s32.totalorder %s14, 0
    %p35 = por %p33, %p34
    %p36 = scmp.ne.s32.totalorder %s22, %s23
    %p37 = scmp.eq.s32.totalorder %s15, 1
    %p38 = por %p36, %p37
    %p40 = scmp.ne.s32.totalorder %s23, %s39
    %p41 = scmp.eq.s32.totalorder %s15, 0
    %p42 = por %p40, %p41
    %s44 = sadd.s32 %s43, 1
    %p47 = scmp.eq.s32.totalorder %s9, 1
    %p48 = scmp.ne.s32.totalorder %s43, %s45
    %p49 = scmp.eq.s32.totalorder %s9, 0
    %p50 = por %p48, %p49
    %p51 = scmp.ne.s32.totalorder %s43, %s45
    %p52 = scmp.eq.s32.totalorder %s14, 1
    %p53 = por %p51, %p52
    %p54 = scmp.ne.s32.totalorder %s45, %s46
    %p55 = scmp.eq.s32.totalorder %s14, 0
    %p56 = por %p54, %p55
    %p57 = scmp.ne.s32.totalorder %s45, %s46
    %p58 = scmp.eq.s32.totalorder %s15, 1
    %p59 = por %p57, %p58
    %p61 = scmp.ne.s32.totalorder %s46, %s60
    %p62 = scmp.eq.s32.totalorder %s15, 0
    %p63 = por %p61, %p62
    %s65 = sadd.s32 %s64, 1
    %p68 = scmp.eq.s32.totalorder %s9, 1
    %p69 = scmp.ne.s32.totalorder %s64, %s66
    %p70 = scmp.eq.s32.totalorder %s9, 0
    %p71 = por %p69, %p70
    %p72 = scmp.ne.s32.totalorder %s64, %s66
    %p73 = scmp.eq.s32.totalorder %s14, 1
    %p74 = por %p72, %p73
    %p75 = scmp.ne.s32.totalorder %s66, %s67
    %p76 = scmp.eq.s32.totalorder %s14, 0
    %p77 = por %p75, %p76
    %p78 = scmp.ne.s32.totalorder %s66, %s67
    %p79 = scmp.eq.s32.totalorder %s15, 1
    %p80 = por %p78, %p79
    %p82 = scmp.ne.s32.totalorder %s67, %s81
    %p83 = scmp.eq.s32.totalorder %s15, 0
    %p84 = por %p82, %p83
    %s85 = ssub.s32 %s9, %s16
    %p86 = scmp.eq.s32.totalorder %s85, 0
    %s88 = sadd.s32 %s87, 1
    %s89 = scalar_select %p86, %s87, %s88
    %p92 = pneg %p86
    %p93 = scmp.eq.s32.totalorder %s9, 1
    %p94 = por %p92, %p93
    %p95 = scmp.ne.s32.totalorder %s87, %s90
    %p96 = scmp.eq.s32.totalorder %s9, 0
    %p97 = por %p95, %p96
    %p98 = scmp.ne.s32.totalorder %s87, %s90
    %p99 = scmp.eq.s32.totalorder %s14, 1
    %p100 = por %p98, %p99
    %p101 = scmp.ne.s32.totalorder %s90, %s91
    %p102 = scmp.eq.s32.totalorder %s14, 0
    %p103 = por %p101, %p102
    %p104 = scmp.ne.s32.totalorder %s90, %s91
    %p105 = scmp.eq.s32.totalorder %s15, 1
    %p106 = por %p104, %p105
    %p108 = scmp.ne.s32.totalorder %s91, %s107
    %p109 = scmp.eq.s32.totalorder %s15, 0
    %p110 = por %p108, %p109
    %p111 = scmp.le.s32.totalorder 1, %s9
    %p112 = scmp.lt.s32.totalorder %s9, 3
    %p113 = pnand %p111, %p112
    %p114 = pneg %p113
    // Predicated region
    $region9: #{decoder_forward.3} parent=5 // pred_check
      _
    $region10: #{decoder_forward.3} parent=5 // pred_check_branch
      %116 = sbr.rel (%p113) target = $region12
    $region11: #{decoder_forward.3} parent=5 // pred_region
      %s117 = ssub.s32 %s9, 1
      // Predicated region
      $region13: #{decoder_forward.3} parent=11 // pred_check
        %p118 = pneg %p56
      $region14: #{decoder_forward.3} parent=11 // pred_check_branch
        %120 = sbr.rel (%p118) target = $region16
      $region15: #{decoder_forward.3} parent=11 // pred_region
        _
      $region16: #{decoder_forward.3} parent=11 // pred_fallthru
        _
      // Predicated region
      $region17: #{decoder_forward.3} parent=11 // pred_check
        %p121 = pneg %p77
      $region18: #{decoder_forward.3} parent=11 // pred_check_branch
        %123 = sbr.rel (%p121) target = $region20
      $region19: #{decoder_forward.3} parent=11 // pred_region
        _
      $region20: #{decoder_forward.3} parent=11 // pred_fallthru
        _
    $region12: #{decoder_forward.3} parent=5 // pred_fallthru
      _
    %p124 = scmp.lt.s32.totalorder %s9, 2
    // Predicated region
    $region21: #{decoder_forward.3} parent=5 // pred_check
      %p125 = pneg %p124
    $region22: #{decoder_forward.3} parent=5 // pred_check_branch
      %127 = sbr.rel (%p125) target = $region24
    $region23: #{decoder_forward.3} parent=5 // pred_region
      // Predicated region
      $region25: #{decoder_forward.3} parent=23 // pred_check
        %p128 = pneg %p29
      $region26: #{decoder_forward.3} parent=23 // pred_check_branch
        %130 = sbr.rel (%p128) target = $region28
      $region27: #{decoder_forward.3} parent=23 // pred_region
        %p131 = scmp.lt.s32.totalorder %s9, 1
        %s132 = scalar_select %p131, %s9, 1
        %s133 = smul.addr %s132, 16
        %s134 = smul.addr %s133, 4
        %s135 = scalar_lea.vmem %s0, %s134
      $region28: #{decoder_forward.3} parent=23 // pred_fallthru
        _
    $region24: #{decoder_forward.3} parent=5 // pred_fallthru
      _
    %p136 = scmp.le.s32.totalorder 1, %s9
    %p137 = scmp.lt.s32.totalorder %s9, 3
    %p138 = pnand %p136, %p137
    %p139 = pneg %p138
    // Predicated region
    $region29: #{decoder_forward.3} parent=5 // pred_check
      _
    $region30: #{decoder_forward.3} parent=5 // pred_check_branch
      %141 = sbr.rel (%p138) target = $region32
    $region31: #{decoder_forward.3} parent=5 // pred_region
      %s142 = ssub.s32 %s9, 1
      %p143 = scmp.lt.s32.totalorder %s14, 1
      %s144 = scalar_select %p143, %s14, 1
      %s145 = smul.addr %s144, 16
      %s146 = smul.addr %s145, 4
      %s147 = scalar_lea.vmem %s0, %s146
      %p148 = pneg %p35
      %p149 = pneg %p32
      %p150 = pneg %p56
      %p151 = pneg %p53
      %p152 = pneg %p77
      %p153 = pneg %p74
      %p154 = pneg %p103
      %p155 = pneg %p100
      %p156 = scmp.lt.s32.totalorder %s14, 1
      %s157 = scalar_select %p156, %s14, 1
      %s158 = smul.addr %s157, 4
      %s159 = smul.addr %s158, 8
      %s160 = scalar_lea.vmem %s3, %s159
      %p161 = scmp.lt.s32.totalorder %s14, 1
      %s162 = scalar_select %p161, %s14, 1
      %s163 = smul.addr %s162, 16
      %s164 = smul.addr %s163, 4
      %s165 = scalar_lea.vmem %s0, %s164
      %p166 = scmp.lt.s32.totalorder %s14, 1
      %s167 = scalar_select %p166, %s14, 1
      %s168 = smul.addr %s167, 4
      %s169 = smul.addr %s168, 8
      %s170 = scalar_lea.vmem %s3, %s169
      %v172 = vld [vmem:[%s1] sm:$0xf]
      %v173 = vld [vmem:[%s165] sm:$0xf]
      %v174 = vld [vmem:[%s165 + $0x4] sm:$0xf]
      %v175 = vld [vmem:[%s165 + $0x8] sm:$0xf]
      %v176 = vld [vmem:[%s165 + $0xc] sm:$0xf]
      %v177 = vld [vmem:[%s2] sm:$0xff]
      %179 = vset.pattern.permute.xlu0 0
      %180 = vperm.xlu0 %179, %v177
      %v181 = vpop.permute.xlu0 %180
      %v187 = vunpack.c.l.b16 %v173
      %v188 = vunpack.c.l.b16 %v174
      %v189 = vunpack.c.l.b16 %v175
      %v190 = vunpack.c.l.b16 %v176
      %v191 = vpack.c.b16 %v188, %v187
      %v192 = vpack.c.b16 %v190, %v189
      %vm195 = vcmask 261120
      %v197 = vsel %vm195, %v172, 0
      %199 = vmatprep.subr.bf16.mxu0 0
      %200 = vmatpush1.bf16.msra.mxu0 0
      %201 = vmatprep.subr.bf16.mxu0 0
      %202 = vmatpush1.bf16.msra.mxu0 0
      %203 = vmatprep.subr.bf16.mxu0 0
      %204 = vmatpush1.bf16.msra.mxu0 0
      %205 = vmatprep.subr.bf16.mxu0 0
      %206 = vmatpush1.bf16.msra.mxu0 0
      %207 = vmatprep.subr.bf16.mxu0 0
      %208 = vmatpush1.bf16.msra.mxu0 0
      %209 = vmatprep.subr.bf16.mxu0 0
      %210 = vmatpush1.bf16.msra.mxu0 0
      %211 = vmatprep.subr.bf16.mxu0 0
      %212 = vmatpush1.bf16.msra.mxu0 %v192
      %213 = vmatprep.subr.bf16.mxu0 0
      %214 = vmatpush1.bf16.msra.mxu0 %v191
      %215 = vmatprep.subr.bf16.mxu0 0
      %216 = vmatpush2.bf16.msra.mxu0 0
      %217 = vmatprep.subr.bf16.mxu0 0
      %218 = vmatpush2.bf16.msra.mxu0 0
      %219 = vmatprep.subr.bf16.mxu0 0
      %220 = vmatpush2.bf16.msra.mxu0 0
      %221 = vmatprep.subr.bf16.mxu0 0
      %222 = vmatpush2.bf16.msra.mxu0 0
      %223 = vmatprep.subr.bf16.mxu0 0
      %224 = vmatpush2.bf16.msra.mxu0 0
      %225 = vmatprep.subr.bf16.mxu0 0
      %226 = vmatpush2.bf16.msra.mxu0 0
      %227 = vmatprep.subr.bf16.mxu0 0
      %228 = vmatpush2.bf16.msra.mxu0 0
      %229 = vmatprep.subr.bf16.mxu0 0
      %230 = vmatpush2.bf16.msra.mxu0 0
      %231 = vmatprep.mubr.bf16.mxu0 0
      %232 = vmatmul.mubr.bf16.gmra.mxu0 %v197
      %v233 = vpop.f32.mrf.mxu0
      %v234 = vadd.f32 %v181, %v233
      %v235 = vpop.f32.mrf.mxu0
      %v236 = vpop.f32.mrf.mxu0
      %v237 = vpop.f32.mrf.mxu0
      %238 = vdwg.mxu0
      %vm239 = vcmask 523264
      %v240 = vsel %vm239, %v234, 0.0
      %241 = vadd.xlane.f32.xlu0 %v240
      %v242 = vpop.xlane.xlu0 %241
      %v243 = vadd.f32 %v242, 0.0
      %s244 = scalar_lea.vmem %s1, 4
      %v245 = vld [vmem:[%s244] sm:$0xf]
      %s246 = scalar_lea.vmem %s165, 16
      %v247 = vld [vmem:[%s246] sm:$0xf]
      %v248 = vld [vmem:[%s246 + $0x4] sm:$0xf]
      %v249 = vld [vmem:[%s246 + $0x8] sm:$0xf]
      %v250 = vld [vmem:[%s246 + $0xc] sm:$0xf]
      %v255 = vunpack.c.l.b16 %v247
      %v256 = vunpack.c.l.b16 %v248
      %v257 = vunpack.c.l.b16 %v249
      %v258 = vunpack.c.l.b16 %v250
      %v259 = vpack.c.b16 %v256, %v255
      %v260 = vpack.c.b16 %v258, %v257
      %v264 = vsel %vm195, %v245, 0
      %266 = vmatprep.subr.bf16.mxu0 0
      %267 = vmatpush1.bf16.msra.mxu0 0
      %268 = vmatprep.subr.bf16.mxu0 0
      %269 = vmatpush1.bf16.msra.mxu0 0
      %270 = vmatprep.subr.bf16.mxu0 0
      %271 = vmatpush1.bf16.msra.mxu0 0
      %272 = vmatprep.subr.bf16.mxu0 0
      %273 = vmatpush1.bf16.msra.mxu0 0
      %274 = vmatprep.subr.bf16.mxu0 0
      %275 = vmatpush1.bf16.msra.mxu0 0
      %276 = vmatprep.subr.bf16.mxu0 0
      %277 = vmatpush1.bf16.msra.mxu0 0
      %278 = vmatprep.subr.bf16.mxu0 0
      %279 = vmatpush1.bf16.msra.mxu0 %v260
      %280 = vmatprep.subr.bf16.mxu0 0
      %281 = vmatpush1.bf16.msra.mxu0 %v259
      %282 = vmatprep.subr.bf16.mxu0 0
      %283 = vmatpush2.bf16.msra.mxu0 0
      %284 = vmatprep.subr.bf16.mxu0 0
      %285 = vmatpush2.bf16.msra.mxu0 0
      %286 = vmatprep.subr.bf16.mxu0 0
      %287 = vmatpush2.bf16.msra.mxu0 0
      %288 = vmatprep.subr.bf16.mxu0 0
      %289 = vmatpush2.bf16.msra.mxu0 0
      %290 = vmatprep.subr.bf16.mxu0 0
      %291 = vmatpush2.bf16.msra.mxu0 0
      %292 = vmatprep.subr.bf16.mxu0 0
      %293 = vmatpush2.bf16.msra.mxu0 0
      %294 = vmatprep.subr.bf16.mxu0 0
      %295 = vmatpush2.bf16.msra.mxu0 0
      %296 = vmatprep.subr.bf16.mxu0 0
      %297 = vmatpush2.bf16.msra.mxu0 0
      %298 = vmatprep.mubr.bf16.mxu0 0
      %299 = vmatmul.mubr.bf16.gmra.mxu0 %v264
      %v300 = vpop.f32.mrf.mxu0
      %v301 = vadd.f32 %v181, %v300
      %v302 = vpop.f32.mrf.mxu0
      %v303 = vpop.f32.mrf.mxu0
      %v304 = vpop.f32.mrf.mxu0
      %305 = vdwg.mxu0
      %v306 = vsel %vm239, %v301, 0.0
      %307 = vadd.xlane.f32.xlu0 %v306
      %v308 = vpop.xlane.xlu0 %307
      %v309 = vadd.f32 %v243, %v308
      %s310 = scalar_lea.vmem %s1, 8
      %v311 = vld [vmem:[%s310] sm:$0xf]
      %s312 = scalar_lea.vmem %s165, 32
      %v313 = vld [vmem:[%s312] sm:$0xf]
      %v314 = vld [vmem:[%s312 + $0x4] sm:$0xf]
      %v315 = vld [vmem:[%s312 + $0x8] sm:$0xf]
      %v316 = vld [vmem:[%s312 + $0xc] sm:$0xf]
      %v321 = vunpack.c.l.b16 %v313
      %v322 = vunpack.c.l.b16 %v314
      %v323 = vunpack.c.l.b16 %v315
      %v324 = vunpack.c.l.b16 %v316
      %v325 = vpack.c.b16 %v322, %v321
      %v326 = vpack.c.b16 %v324, %v323
      %v330 = vsel %vm195, %v311, 0
      %332 = vmatprep.subr.bf16.mxu0 0
      %333 = vmatpush1.bf16.msra.mxu0 0
      %334 = vmatprep.subr.bf16.mxu0 0
      %335 = vmatpush1.bf16.msra.mxu0 0
      %336 = vmatprep.subr.bf16.mxu0 0
      %337 = vmatpush1.bf16.msra.mxu0 0
      %338 = vmatprep.subr.bf16.mxu0 0
      %339 = vmatpush1.bf16.msra.mxu0 0
      %340 = vmatprep.subr.bf16.mxu0 0
      %341 = vmatpush1.bf16.msra.mxu0 0
      %342 = vmatprep.subr.bf16.mxu0 0
      %343 = vmatpush1.bf16.msra.mxu0 0
      %344 = vmatprep.subr.bf16.mxu0 0
      %345 = vmatpush1.bf16.msra.mxu0 %v326
      %346 = vmatprep.subr.bf16.mxu0 0
      %347 = vmatpush1.bf16.msra.mxu0 %v325
      %348 = vmatprep.subr.bf16.mxu0 0
      %349 = vmatpush2.bf16.msra.mxu0 0
      %350 = vmatprep.subr.bf16.mxu0 0
      %351 = vmatpush2.bf16.msra.mxu0 0
      %352 = vmatprep.subr.bf16.mxu0 0
      %353 = vmatpush2.bf16.msra.mxu0 0
      %354 = vmatprep.subr.bf16.mxu0 0
      %355 = vmatpush2.bf16.msra.mxu0 0
      %356 = vmatprep.subr.bf16.mxu0 0
      %357 = vmatpush2.bf16.msra.mxu0 0
      %358 = vmatprep.subr.bf16.mxu0 0
      %359 = vmatpush2.bf16.msra.mxu0 0
      %360 = vmatprep.subr.bf16.mxu0 0
      %361 = vmatpush2.bf16.msra.mxu0 0
      %362 = vmatprep.subr.bf16.mxu0 0
      %363 = vmatpush2.bf16.msra.mxu0 0
      %364 = vmatprep.mubr.bf16.mxu0 0
      %365 = vmatmul.mubr.bf16.gmra.mxu0 %v330
      %v366 = vpop.f32.mrf.mxu0
      %v367 = vadd.f32 %v181, %v366
      %v368 = vpop.f32.mrf.mxu0
      %v369 = vpop.f32.mrf.mxu0
      %v370 = vpop.f32.mrf.mxu0
      %371 = vdwg.mxu0
      %v372 = vsel %vm239, %v367, 0.0
      %373 = vadd.xlane.f32.xlu0 %v372
      %v374 = vpop.xlane.xlu0 %373
      %v375 = vadd.f32 %v309, %v374
      %s376 = scalar_lea.vmem %s1, 12
      %v377 = vld [vmem:[%s376] sm:$0xf]
      %s378 = scalar_lea.vmem %s165, 48
      %v379 = vld [vmem:[%s378] sm:$0xf]
      %v380 = vld [vmem:[%s378 + $0x4] sm:$0xf]
      %v381 = vld [vmem:[%s378 + $0x8] sm:$0xf]
      %v382 = vld [vmem:[%s378 + $0xc] sm:$0xf]
      %v387 = vunpack.c.l.b16 %v379
      %v388 = vunpack.c.l.b16 %v380
      %v389 = vunpack.c.l.b16 %v381
      %v390 = vunpack.c.l.b16 %v382
      %v391 = vpack.c.b16 %v388, %v387
      %v392 = vpack.c.b16 %v390, %v389
      %v396 = vsel %vm195, %v377, 0
      %398 = vmatprep.subr.bf16.mxu0 0
      %399 = vmatpush1.bf16.msra.mxu0 0
      %400 = vmatprep.subr.bf16.mxu0 0
      %401 = vmatpush1.bf16.msra.mxu0 0
      %402 = vmatprep.subr.bf16.mxu0 0
      %403 = vmatpush1.bf16.msra.mxu0 0
      %404 = vmatprep.subr.bf16.mxu0 0
      %405 = vmatpush1.bf16.msra.mxu0 0
      %406 = vmatprep.subr.bf16.mxu0 0
      %407 = vmatpush1.bf16.msra.mxu0 0
      %408 = vmatprep.subr.bf16.mxu0 0
      %409 = vmatpush1.bf16.msra.mxu0 0
      %410 = vmatprep.subr.bf16.mxu0 0
      %411 = vmatpush1.bf16.msra.mxu0 %v392
      %412 = vmatprep.subr.bf16.mxu0 0
      %413 = vmatpush1.bf16.msra.mxu0 %v391
      %414 = vmatprep.subr.bf16.mxu0 0
      %415 = vmatpush2.bf16.msra.mxu0 0
      %416 = vmatprep.subr.bf16.mxu0 0
      %417 = vmatpush2.bf16.msra.mxu0 0
      %418 = vmatprep.subr.bf16.mxu0 0
      %419 = vmatpush2.bf16.msra.mxu0 0
      %420 = vmatprep.subr.bf16.mxu0 0
      %421 = vmatpush2.bf16.msra.mxu0 0
      %422 = vmatprep.subr.bf16.mxu0 0
      %423 = vmatpush2.bf16.msra.mxu0 0
      %424 = vmatprep.subr.bf16.mxu0 0
      %425 = vmatpush2.bf16.msra.mxu0 0
      %426 = vmatprep.subr.bf16.mxu0 0
      %427 = vmatpush2.bf16.msra.mxu0 0
      %428 = vmatprep.subr.bf16.mxu0 0
      %429 = vmatpush2.bf16.msra.mxu0 0
      %430 = vmatprep.mubr.bf16.mxu0 0
      %431 = vmatmul.mubr.bf16.gmra.mxu0 %v396
      %v432 = vpop.f32.mrf.mxu0
      %v433 = vadd.f32 %v181, %v432
      %v434 = vpop.f32.mrf.mxu0
      %v435 = vpop.f32.mrf.mxu0
      %v436 = vpop.f32.mrf.mxu0
      %437 = vdwg.mxu0
      %v438 = vsel %vm239, %v433, 0.0
      %439 = vadd.xlane.f32.xlu0 %v438
      %v440 = vpop.xlane.xlu0 %439
      %v441 = vadd.f32 %v375, %v440
      %v442 = vmul.f32 %v441, 0.00390625
      %v443 = vsub.f32 %v234, %v442
      %v444 = vmul.f32 %v443, %v443
      %v445 = vsel %vm239, %v444, 0.0
      %446 = vadd.xlane.f32.xlu0 %v445
      %v447 = vpop.xlane.xlu0 %446
      %v448 = vadd.f32 %v447, 0.0
      %v449 = vsub.f32 %v301, %v442
      %v450 = vmul.f32 %v449, %v449
      %v451 = vsel %vm239, %v450, 0.0
      %452 = vadd.xlane.f32.xlu0 %v451
      %v453 = vpop.xlane.xlu0 %452
      %v454 = vadd.f32 %v448, %v453
      %v455 = vsub.f32 %v367, %v442
      %v456 = vmul.f32 %v455, %v455
      %v457 = vsel %vm239, %v456, 0.0
      %458 = vadd.xlane.f32.xlu0 %v457
      %v459 = vpop.xlane.xlu0 %458
      %v460 = vadd.f32 %v454, %v459
      %v461 = vsub.f32 %v433, %v442
      %v462 = vmul.f32 %v461, %v461
      %v463 = vsel %vm239, %v462, 0.0
      %464 = vadd.xlane.f32.xlu0 %v463
      %v465 = vpop.xlane.xlu0 %464
      %v466 = vadd.f32 %v460, %v465
      %v467 = vmul.f32 %v466, 0.00390625
      %v468 = vadd.f32 %v467, 1e-05
      %v469 = vrsqrt.pop %v468
      %v470 = vmul.f32 %v443, %v469
      %v471 = vmax.f32 %v470, 0.0
      %472 = vst.msk [vmem:[%s170] sm:$0xff] %vm239, %v471
      %v473 = vmul.f32 %v449, %v469
      %v474 = vmax.f32 %v473, 0.0
      %s475 = scalar_lea.vmem %s170, 8
      %476 = vst.msk [vmem:[%s475] sm:$0xff] %vm239, %v474
      %v477 = vmul.f32 %v455, %v469
      %v478 = vmax.f32 %v477, 0.0
      %s479 = scalar_lea.vmem %s170, 16
      %480 = vst.msk [vmem:[%s479] sm:$0xff] %vm239, %v478
      %v481 = vmul.f32 %v461, %v469
      %v482 = vmax.f32 %v481, 0.0
      %s483 = scalar_lea.vmem %s170, 24
      %484 = vst.msk [vmem:[%s483] sm:$0xff] %vm239, %v482
      %p485 = scmp.lt.s32.totalorder %s14, 1
      %s486 = scalar_select %p485, %s14, 1
      %s487 = smul.addr %s486, 4
      %s488 = smul.addr %s487, 8
      %s489 = scalar_lea.vmem %s3, %s488
      // Predicated region
      $region33: #{decoder_forward.3} parent=31 // pred_check
        %p490 = pneg %p100
      $region34: #{decoder_forward.3} parent=31 // pred_check_branch
        %492 = sbr.rel (%p490) target = $region36
      $region35: #{decoder_forward.3} parent=31 // pred_region
        _
      $region36: #{decoder_forward.3} parent=31 // pred_fallthru
        _
    $region32: #{decoder_forward.3} parent=5 // pred_fallthru
      _
    %p493 = scmp.le.s32.totalorder 2, %s9
    // Predicated region
    $region37: #{decoder_forward.3} parent=5 // pred_check
      %p494 = pneg %p493
    $region38: #{decoder_forward.3} parent=5 // pred_check_branch
      %496 = sbr.rel (%p494) target = $region40
    $region39: #{decoder_forward.3} parent=5 // pred_region
      %s497 = ssub.s32 %s9, 2
      // Predicated region
      $region41: #{decoder_forward.3} parent=39 // pred_check
        %p498 = pneg %p106
      $region42: #{decoder_forward.3} parent=39 // pred_check_branch
        %500 = sbr.rel (%p498) target = $region44
      $region43: #{decoder_forward.3} parent=39 // pred_region
        %p501 = scmp.lt.s32.totalorder %s15, 1
        %s502 = scalar_select %p501, %s15, 1
        %s503 = smul.addr %s502, 4
        %s504 = smul.addr %s503, 8
        %s505 = scalar_lea.vmem %s3, %s504
      $region44: #{decoder_forward.3} parent=39 // pred_fallthru
        _
    $region40: #{decoder_forward.3} parent=5 // pred_fallthru
      _
  $region6: #{decoder_forward.3} parent=0 // loop_footer
    %s13 = sadd.s32 1, %s9
  $region7: #{decoder_forward.3} parent=0 // loop_footer_branch
    %8 = sbr.rel target = $region3
  $region8: #{decoder_forward.3} parent=0 // loop_exit
    _

// kernel: decoder_forward.4
$region0: #{decoder_forward.4}
  #allocation0 [shape = 'u32[]', space=smem, size = 0x4, offset = 0x4, fixed_abs, tag = 'smem constant byte address 0x4 - core index']
  #allocation1 [shape = 'u32[144,128]{1,0:T(1,128)}', space=vmem, size = 0x12000, scoped, tag = 'internal scratch']
  %s0 = inlined_call_operand.vmem [shape: bf16[2,4,32,256], index: 0, kind: input, shape index: {}]
  %s1 = inlined_call_operand.vmem [shape: bf16[4,4,32], index: 1, kind: input, shape index: {}]
  %s2 = inlined_call_operand.vmem [shape: f32[4,1], index: 2, kind: input, shape index: {}]
  %s3 = inlined_call_operand.vmem [shape: f32[2,4,4,256], index: 3, kind: output, shape index: {}]
  %s4 = sld [smem:[#allocation0]]
  $region45: #{decoder_forward.4} parent=0
    _
  %s6 = ssub.s32 1, %s4
  %s7 = scalar_select 0, %s6, %s4
  loop: start=0, step=1, limit=4
  $region2: #{decoder_forward.4} parent=0 // loop_pre_header
    _
  $region3: #{decoder_forward.4} parent=0 // loop_header
    %s9 = sphi 0, %s13
    %p10 = scmp.ge.s32.totalorder %s9, 4
    %s19 = sphi 0, %s21
    %s22 = sphi 0, %s19
    %s23 = sphi 0, %s22
    %s39 = sphi 0, %s23
    %s43 = sphi 0, %s43
    %s45 = sphi 0, %s43
    %s46 = sphi 0, %s45
    %s60 = sphi 0, %s46
    %s64 = sphi 0, %s64
    %s66 = sphi 0, %s64
    %s67 = sphi 0, %s66
    %s81 = sphi 0, %s67
    %s87 = sphi 0, %s89
    %s90 = sphi 0, %s87
    %s91 = sphi 0, %s90
    %s107 = sphi 0, %s91
  $region4: #{decoder_forward.4} parent=0 // loop_header_branch
    %12 = sbr.rel (%p10) target = $region8
  $region5: #{decoder_forward.4} parent=0 // loop_body
    %s14 = ssub.s32 %s9, 1
    %s15 = ssub.s32 %s9, 2
    %s16 = sadd.s32 %s9, 1
    %s17 = ssub.s32 %s9, %s16
    %p18 = scmp.eq.s32.totalorder %s17, 0
    %s20 = sadd.s32 %s19, 1
    %s21 = scalar_select %p18, %s19, %s20
    %p24 = pneg %p18
    %p25 = scmp.eq.s32.totalorder %s9, 1
    %p26 = por %p24, %p25
    %p27 = scmp.ne.s32.totalorder %s19, %s22
    %p28 = scmp.eq.s32.totalorder %s9, 0
    %p29 = por %p27, %p28
    %p30 = scmp.ne.s32.totalorder %s19, %s22
    %p31 = scmp.eq.s32.totalorder %s14, 1
    %p32 = por %p30, %p31
    %p33 = scmp.ne.s32.totalorder %s22, %s23
    %p34 = scmp.eq.s32.totalorder %s14, 0
    %p35 = por %p33, %p34
    %p36 = scmp.ne.s32.totalorder %s22, %s23
    %p37 = scmp.eq.s32.totalorder %s15, 1
    %p38 = por %p36, %p37
    %p40 = scmp.ne.s32.totalorder %s23, %s39
    %p41 = scmp.eq.s32.totalorder %s15, 0
    %p42 = por %p40, %p41
    %s44 = sadd.s32 %s43, 1
    %p47 = scmp.eq.s32.totalorder %s9, 1
    %p48 = scmp.ne.s32.totalorder %s43, %s45
    %p49 = scmp.eq.s32.totalorder %s9, 0
    %p50 = por %p48, %p49
    %p51 = scmp.ne.s32.totalorder %s43, %s45
    %p52 = scmp.eq.s32.totalorder %s14, 1
    %p53 = por %p51, %p52
    %p54 = scmp.ne.s32.totalorder %s45, %s46
    %p55 = scmp.eq.s32.totalorder %s14, 0
    %p56 = por %p54, %p55
    %p57 = scmp.ne.s32.totalorder %s45, %s46
    %p58 = scmp.eq.s32.totalorder %s15, 1
    %p59 = por %p57, %p58
    %p61 = scmp.ne.s32.totalorder %s46, %s60
    %p62 = scmp.eq.s32.totalorder %s15, 0
    %p63 = por %p61, %p62
    %s65 = sadd.s32 %s64, 1
    %p68 = scmp.eq.s32.totalorder %s9, 1
    %p69 = scmp.ne.s32.totalorder %s64, %s66
    %p70 = scmp.eq.s32.totalorder %s9, 0
    %p71 = por %p69, %p70
    %p72 = scmp.ne.s32.totalorder %s64, %s66
    %p73 = scmp.eq.s32.totalorder %s14, 1
    %p74 = por %p72, %p73
    %p75 = scmp.ne.s32.totalorder %s66, %s67
    %p76 = scmp.eq.s32.totalorder %s14, 0
    %p77 = por %p75, %p76
    %p78 = scmp.ne.s32.totalorder %s66, %s67
    %p79 = scmp.eq.s32.totalorder %s15, 1
    %p80 = por %p78, %p79
    %p82 = scmp.ne.s32.totalorder %s67, %s81
    %p83 = scmp.eq.s32.totalorder %s15, 0
    %p84 = por %p82, %p83
    %s85 = ssub.s32 %s9, %s16
    %p86 = scmp.eq.s32.totalorder %s85, 0
    %s88 = sadd.s32 %s87, 1
    %s89 = scalar_select %p86, %s87, %s88
    %p92 = pneg %p86
    %p93 = scmp.eq.s32.totalorder %s9, 1
    %p94 = por %p92, %p93
    %p95 = scmp.ne.s32.totalorder %s87, %s90
    %p96 = scmp.eq.s32.totalorder %s9, 0
    %p97 = por %p95, %p96
    %p98 = scmp.ne.s32.totalorder %s87, %s90
    %p99 = scmp.eq.s32.totalorder %s14, 1
    %p100 = por %p98, %p99
    %p101 = scmp.ne.s32.totalorder %s90, %s91
    %p102 = scmp.eq.s32.totalorder %s14, 0
    %p103 = por %p101, %p102
    %p104 = scmp.ne.s32.totalorder %s90, %s91
    %p105 = scmp.eq.s32.totalorder %s15, 1
    %p106 = por %p104, %p105
    %p108 = scmp.ne.s32.totalorder %s91, %s107
    %p109 = scmp.eq.s32.totalorder %s15, 0
    %p110 = por %p108, %p109
    %p111 = scmp.le.s32.totalorder 1, %s9
    %p112 = scmp.lt.s32.totalorder %s9, 3
    %p113 = pnand %p111, %p112
    %p114 = pneg %p113
    // Predicated region
    $region9: #{decoder_forward.4} parent=5 // pred_check
      _
    $region10: #{decoder_forward.4} parent=5 // pred_check_branch
      %116 = sbr.rel (%p113) target = $region12
    $region11: #{decoder_forward.4} parent=5 // pred_region
      %s117 = ssub.s32 %s9, 1
      // Predicated region
      $region13: #{decoder_forward.4} parent=11 // pred_check
        %p118 = pneg %p56
      $region14: #{decoder_forward.4} parent=11 // pred_check_branch
        %120 = sbr.rel (%p118) target = $region16
      $region15: #{decoder_forward.4} parent=11 // pred_region
        _
      $region16: #{decoder_forward.4} parent=11 // pred_fallthru
        _
      // Predicated region
      $region17: #{decoder_forward.4} parent=11 // pred_check
        %p121 = pneg %p77
      $region18: #{decoder_forward.4} parent=11 // pred_check_branch
        %123 = sbr.rel (%p121) target = $region20
      $region19: #{decoder_forward.4} parent=11 // pred_region
        _
      $region20: #{decoder_forward.4} parent=11 // pred_fallthru
        _
    $region12: #{decoder_forward.4} parent=5 // pred_fallthru
      _
    %p124 = scmp.lt.s32.totalorder %s9, 2
    // Predicated region
    $region21: #{decoder_forward.4} parent=5 // pred_check
      %p125 = pneg %p124
    $region22: #{decoder_forward.4} parent=5 // pred_check_branch
      %127 = sbr.rel (%p125) target = $region24
    $region23: #{decoder_forward.4} parent=5 // pred_region
      // Predicated region
      $region25: #{decoder_forward.4} parent=23 // pred_check
        %p128 = pneg %p29
      $region26: #{decoder_forward.4} parent=23 // pred_check_branch
        %130 = sbr.rel (%p128) target = $region28
      $region27: #{decoder_forward.4} parent=23 // pred_region
        %p131 = scmp.lt.s32.totalorder %s9, 1
        %s132 = scalar_select %p131, %s9, 1
        %s133 = smul.addr %s132, 32
        %s134 = smul.addr %s133, 4
        %s135 = scalar_lea.vmem %s0, %s134
      $region28: #{decoder_forward.4} parent=23 // pred_fallthru
        _
    $region24: #{decoder_forward.4} parent=5 // pred_fallthru
      _
    %p136 = scmp.le.s32.totalorder 1, %s9
    %p137 = scmp.lt.s32.totalorder %s9, 3
    %p138 = pnand %p136, %p137
    %p139 = pneg %p138
    // Predicated region
    $region29: #{decoder_forward.4} parent=5 // pred_check
      _
    $region30: #{decoder_forward.4} parent=5 // pred_check_branch
      %141 = sbr.rel (%p138) target = $region32
    $region31: #{decoder_forward.4} parent=5 // pred_region
      %s142 = ssub.s32 %s9, 1
      %p143 = scmp.lt.s32.totalorder %s14, 1
      %s144 = scalar_select %p143, %s14, 1
      %s145 = smul.addr %s144, 32
      %s146 = smul.addr %s145, 4
      %s147 = scalar_lea.vmem %s0, %s146
      %p148 = pneg %p35
      %p149 = pneg %p32
      %p150 = pneg %p56
      %p151 = pneg %p53
      %p152 = pneg %p77
      %p153 = pneg %p74
      %p154 = pneg %p103
      %p155 = pneg %p100
      %p156 = scmp.lt.s32.totalorder %s14, 1
      %s157 = scalar_select %p156, %s14, 1
      %s158 = smul.addr %s157, 8
      %s159 = smul.addr %s158, 4
      %s160 = scalar_lea.vmem %s3, %s159
      %p161 = scmp.lt.s32.totalorder %s14, 1
      %s162 = scalar_select %p161, %s14, 1
      %s163 = smul.addr %s162, 32
      %s164 = smul.addr %s163, 4
      %s165 = scalar_lea.vmem %s0, %s164
      %p166 = scmp.lt.s32.totalorder %s14, 1
      %s167 = scalar_select %p166, %s14, 1
      %s168 = smul.addr %s167, 8
      %s169 = smul.addr %s168, 4
      %s170 = scalar_lea.vmem %s3, %s169
      %v172 = vld [vmem:[%s1] sm:$0x3]
      %v173 = vld [vmem:[%s165] sm:$0xff]
      %v174 = vld [vmem:[%s165 + $0x8] sm:$0xff]
      %v175 = vld [vmem:[%s165 + $0x10] sm:$0xff]
      %v176 = vld [vmem:[%s165 + $0x18] sm:$0xff]
      %v177 = vld [vmem:[%s2] sm:$0xf]
      %179 = vset.pattern.permute.xlu0 0
      %180 = vperm.xlu0 %179, %v177
      %v181 = vpop.permute.xlu0 %180
      %v187 = vunpack.c.l.b16 %v173
      %v188 = vunpack.c.h.b16 %v173
      %v189 = vunpack.c.l.b16 %v174
      %v190 = vunpack.c.h.b16 %v174
      %v191 = vunpack.c.l.b16 %v175
      %v192 = vunpack.c.h.b16 %v175
      %v193 = vunpack.c.l.b16 %v176
      %v194 = vunpack.c.h.b16 %v176
      %v195 = vpack.c.b16 %v189, %v187
      %v196 = vpack.c.b16 %v190, %v188
      %v197 = vpack.c.b16 %v193, %v191
      %v198 = vpack.c.b16 %v194, %v192
      %vm203 = vcmask 261120
      %v205 = vsel %vm203, %v172, 0
      %207 = vmatprep.subr.bf16.mxu0 0
      %208 = vmatpush1.bf16.msra.mxu0 0
      %209 = vmatprep.subr.bf16.mxu0 0
      %210 = vmatpush1.bf16.msra.mxu0 0
      %211 = vmatprep.subr.bf16.mxu0 0
      %212 = vmatpush1.bf16.msra.mxu0 0
      %213 = vmatprep.subr.bf16.mxu0 0
      %214 = vmatpush1.bf16.msra.mxu0 0
      %215 = vmatprep.subr.bf16.mxu0 0
      %216 = vmatpush1.bf16.msra.mxu0 0
      %217 = vmatprep.subr.bf16.mxu0 0
      %218 = vmatpush1.bf16.msra.mxu0 0
      %219 = vmatprep.subr.bf16.mxu0 %v198
      %220 = vmatpush1.bf16.msra.mxu0 %v197
      %221 = vmatprep.subr.bf16.mxu0 %v196
      %222 = vmatpush1.bf16.msra.mxu0 %v195
      %223 = vmatprep.subr.bf16.mxu0 0
      %224 = vmatpush2.bf16.msra.mxu0 0
      %225 = vmatprep.subr.bf16.mxu0 0
      %226 = vmatpush2.bf16.msra.mxu0 0
      %227 = vmatprep.subr.bf16.mxu0 0
      %228 = vmatpush2.bf16.msra.mxu0 0
      %229 = vmatprep.subr.bf16.mxu0 0
      %230 = vmatpush2.bf16.msra.mxu0 0
      %231 = vmatprep.subr.bf16.mxu0 0
      %232 = vmatpush2.bf16.msra.mxu0 0
      %233 = vmatprep.subr.bf16.mxu0 0
      %234 = vmatpush2.bf16.msra.mxu0 0
      %235 = vmatprep.subr.bf16.mxu0 0
      %236 = vmatpush2.bf16.msra.mxu0 0
      %237 = vmatprep.subr.bf16.mxu0 0
      %238 = vmatpush2.bf16.msra.mxu0 0
      %239 = vmatprep.mubr.bf16.mxu0 0
      %240 = vmatmul.mubr.bf16.gmra.mxu0 %v205
      %v241 = vpop.f32.mrf.mxu0
      %v242 = vadd.f32 %v181, %v241
      %v243 = vpop.f32.mrf.mxu0
      %v244 = vadd.f32 %v181, %v243
      %v245 = vpop.f32.mrf.mxu0
      %v246 = vpop.f32.mrf.mxu0
      %247 = vdwg.mxu0
      %vm248 = vcmask 1043456
      %v249 = vsel %vm248, %v242, 0.0
      %v250 = vsel %vm248, %v244, 0.0
      %v251 = vadd.f32 %v249, %v250
      %252 = vadd.xlane.f32.xlu0 %v251
      %v253 = vpop.xlane.xlu0 %252
      %v254 = vadd.f32 %v253, 0.0
      %s255 = scalar_lea.vmem %s1, 2
      %v256 = vld [vmem:[%s255] sm:$0x3]
      %s257 = scalar_lea.vmem %s165, 32
      %v258 = vld [vmem:[%s257] sm:$0xff]
      %v259 = vld [vmem:[%s257 + $0x8] sm:$0xff]
      %v260 = vld [vmem:[%s257 + $0x10] sm:$0xff]
      %v261 = vld [vmem:[%s257 + $0x18] sm:$0xff]
      %v266 = vunpack.c.l.b16 %v258
      %v267 = vunpack.c.h.b16 %v258
      %v268 = vunpack.c.l.b16 %v259
      %v269 = vunpack.c.h.b16 %v259
      %v270 = vunpack.c.l.b16 %v260
      %v271 = vunpack.c.h.b16 %v260
      %v272 = vunpack.c.l.b16 %v261
      %v273 = vunpack.c.h.b16 %v261
      %v274 = vpack.c.b16 %v268, %v266
      %v275 = vpack.c.b16 %v269, %v267
      %v276 = vpack.c.b16 %v272, %v270
      %v277 = vpack.c.b16 %v273, %v271
      %v283 = vsel %vm203, %v256, 0
      %285 = vmatprep.subr.bf16.mxu0 0
      %286 = vmatpush1.bf16.msra.mxu0 0
      %287 = vmatprep.subr.bf16.mxu0 0
      %288 = vmatpush1.bf16.msra.mxu0 0
      %289 = vmatprep.subr.bf16.mxu0 0
      %290 = vmatpush1.bf16.msra.mxu0 0
      %291 = vmatprep.subr.bf16.mxu0 0
      %292 = vmatpush1.bf16.msra.mxu0 0
      %293 = vmatprep.subr.bf16.mxu0 0
      %294 = vmatpush1.bf16.msra.mxu0 0
      %295 = vmatprep.subr.bf16.mxu0 0
      %296 = vmatpush1.bf16.msra.mxu0 0
      %297 = vmatprep.subr.bf16.mxu0 %v277
      %298 = vmatpush1.bf16.msra.mxu0 %v276
      %299 = vmatprep.subr.bf16.mxu0 %v275
      %300 = vmatpush1.bf16.msra.mxu0 %v274
      %301 = vmatprep.subr.bf16.mxu0 0
      %302 = vmatpush2.bf16.msra.mxu0 0
      %303 = vmatprep.subr.bf16.mxu0 0
      %304 = vmatpush2.bf16.msra.mxu0 0
      %305 = vmatprep.subr.bf16.mxu0 0
      %306 = vmatpush2.bf16.msra.mxu0 0
      %307 = vmatprep.subr.bf16.mxu0 0
      %308 = vmatpush2.bf16.msra.mxu0 0
      %309 = vmatprep.subr.bf16.mxu0 0
      %310 = vmatpush2.bf16.msra.mxu0 0
      %311 = vmatprep.subr.bf16.mxu0 0
      %312 = vmatpush2.bf16.msra.mxu0 0
      %313 = vmatprep.subr.bf16.mxu0 0
      %314 = vmatpush2.bf16.msra.mxu0 0
      %315 = vmatprep.subr.bf16.mxu0 0
      %316 = vmatpush2.bf16.msra.mxu0 0
      %317 = vmatprep.mubr.bf16.mxu0 0
      %318 = vmatmul.mubr.bf16.gmra.mxu0 %v283
      %v319 = vpop.f32.mrf.mxu0
      %v320 = vadd.f32 %v181, %v319
      %v321 = vpop.f32.mrf.mxu0
      %v322 = vadd.f32 %v181, %v321
      %v323 = vpop.f32.mrf.mxu0
      %v324 = vpop.f32.mrf.mxu0
      %325 = vdwg.mxu0
      %v326 = vsel %vm248, %v320, 0.0
      %v327 = vsel %vm248, %v322, 0.0
      %v328 = vadd.f32 %v326, %v327
      %329 = vadd.xlane.f32.xlu0 %v328
      %v330 = vpop.xlane.xlu0 %329
      %v331 = vadd.f32 %v254, %v330
      %s332 = scalar_lea.vmem %s1, 4
      %v333 = vld [vmem:[%s332] sm:$0x3]
      %s334 = scalar_lea.vmem %s165, 64
      %v335 = vld [vmem:[%s334] sm:$0xff]
      %v336 = vld [vmem:[%s334 + $0x8] sm:$0xff]
      %v337 = vld [vmem:[%s334 + $0x10] sm:$0xff]
      %v338 = vld [vmem:[%s334 + $0x18] sm:$0xff]
      %v343 = vunpack.c.l.b16 %v335
      %v344 = vunpack.c.h.b16 %v335
      %v345 = vunpack.c.l.b16 %v336
      %v346 = vunpack.c.h.b16 %v336
      %v347 = vunpack.c.l.b16 %v337
      %v348 = vunpack.c.h.b16 %v337
      %v349 = vunpack.c.l.b16 %v338
      %v350 = vunpack.c.h.b16 %v338
      %v351 = vpack.c.b16 %v345, %v343
      %v352 = vpack.c.b16 %v346, %v344
      %v353 = vpack.c.b16 %v349, %v347
      %v354 = vpack.c.b16 %v350, %v348
      %v360 = vsel %vm203, %v333, 0
      %362 = vmatprep.subr.bf16.mxu0 0
      %363 = vmatpush1.bf16.msra.mxu0 0
      %364 = vmatprep.subr.bf16.mxu0 0
      %365 = vmatpush1.bf16.msra.mxu0 0
      %366 = vmatprep.subr.bf16.mxu0 0
      %367 = vmatpush1.bf16.msra.mxu0 0
      %368 = vmatprep.subr.bf16.mxu0 0
      %369 = vmatpush1.bf16.msra.mxu0 0
      %370 = vmatprep.subr.bf16.mxu0 0
      %371 = vmatpush1.bf16.msra.mxu0 0
      %372 = vmatprep.subr.bf16.mxu0 0
      %373 = vmatpush1.bf16.msra.mxu0 0
      %374 = vmatprep.subr.bf16.mxu0 %v354
      %375 = vmatpush1.bf16.msra.mxu0 %v353
      %376 = vmatprep.subr.bf16.mxu0 %v352
      %377 = vmatpush1.bf16.msra.mxu0 %v351
      %378 = vmatprep.subr.bf16.mxu0 0
      %379 = vmatpush2.bf16.msra.mxu0 0
      %380 = vmatprep.subr.bf16.mxu0 0
      %381 = vmatpush2.bf16.msra.mxu0 0
      %382 = vmatprep.subr.bf16.mxu0 0
      %383 = vmatpush2.bf16.msra.mxu0 0
      %384 = vmatprep.subr.bf16.mxu0 0
      %385 = vmatpush2.bf16.msra.mxu0 0
      %386 = vmatprep.subr.bf16.mxu0 0
      %387 = vmatpush2.bf16.msra.mxu0 0
      %388 = vmatprep.subr.bf16.mxu0 0
      %389 = vmatpush2.bf16.msra.mxu0 0
      %390 = vmatprep.subr.bf16.mxu0 0
      %391 = vmatpush2.bf16.msra.mxu0 0
      %392 = vmatprep.subr.bf16.mxu0 0
      %393 = vmatpush2.bf16.msra.mxu0 0
      %394 = vmatprep.mubr.bf16.mxu0 0
      %395 = vmatmul.mubr.bf16.gmra.mxu0 %v360
      %v396 = vpop.f32.mrf.mxu0
      %v397 = vadd.f32 %v181, %v396
      %v398 = vpop.f32.mrf.mxu0
      %v399 = vadd.f32 %v181, %v398
      %v400 = vpop.f32.mrf.mxu0
      %v401 = vpop.f32.mrf.mxu0
      %402 = vdwg.mxu0
      %v403 = vsel %vm248, %v397, 0.0
      %v404 = vsel %vm248, %v399, 0.0
      %v405 = vadd.f32 %v403, %v404
      %406 = vadd.xlane.f32.xlu0 %v405
      %v407 = vpop.xlane.xlu0 %406
      %v408 = vadd.f32 %v331, %v407
      %s409 = scalar_lea.vmem %s1, 6
      %v410 = vld [vmem:[%s409] sm:$0x3]
      %s411 = scalar_lea.vmem %s165, 96
      %v412 = vld [vmem:[%s411] sm:$0xff]
      %v413 = vld [vmem:[%s411 + $0x8] sm:$0xff]
      %v414 = vld [vmem:[%s411 + $0x10] sm:$0xff]
      %v415 = vld [vmem:[%s411 + $0x18] sm:$0xff]
      %v420 = vunpack.c.l.b16 %v412
      %v421 = vunpack.c.h.b16 %v412
      %v422 = vunpack.c.l.b16 %v413
      %v423 = vunpack.c.h.b16 %v413
      %v424 = vunpack.c.l.b16 %v414
      %v425 = vunpack.c.h.b16 %v414
      %v426 = vunpack.c.l.b16 %v415
      %v427 = vunpack.c.h.b16 %v415
      %v428 = vpack.c.b16 %v422, %v420
      %v429 = vpack.c.b16 %v423, %v421
      %v430 = vpack.c.b16 %v426, %v424
      %v431 = vpack.c.b16 %v427, %v425
      %v437 = vsel %vm203, %v410, 0
      %439 = vmatprep.subr.bf16.mxu0 0
      %440 = vmatpush1.bf16.msra.mxu0 0
      %441 = vmatprep.subr.bf16.mxu0 0
      %442 = vmatpush1.bf16.msra.mxu0 0
      %443 = vmatprep.subr.bf16.mxu0 0
      %444 = vmatpush1.bf16.msra.mxu0 0
      %445 = vmatprep.subr.bf16.mxu0 0
      %446 = vmatpush1.bf16.msra.mxu0 0
      %447 = vmatprep.subr.bf16.mxu0 0
      %448 = vmatpush1.bf16.msra.mxu0 0
      %449 = vmatprep.subr.bf16.mxu0 0
      %450 = vmatpush1.bf16.msra.mxu0 0
      %451 = vmatprep.subr.bf16.mxu0 %v431
      %452 = vmatpush1.bf16.msra.mxu0 %v430
      %453 = vmatprep.subr.bf16.mxu0 %v429
      %454 = vmatpush1.bf16.msra.mxu0 %v428
      %455 = vmatprep.subr.bf16.mxu0 0
      %456 = vmatpush2.bf16.msra.mxu0 0
      %457 = vmatprep.subr.bf16.mxu0 0
      %458 = vmatpush2.bf16.msra.mxu0 0
      %459 = vmatprep.subr.bf16.mxu0 0
      %460 = vmatpush2.bf16.msra.mxu0 0
      %461 = vmatprep.subr.bf16.mxu0 0
      %462 = vmatpush2.bf16.msra.mxu0 0
      %463 = vmatprep.subr.bf16.mxu0 0
      %464 = vmatpush2.bf16.msra.mxu0 0
      %465 = vmatprep.subr.bf16.mxu0 0
      %466 = vmatpush2.bf16.msra.mxu0 0
      %467 = vmatprep.subr.bf16.mxu0 0
      %468 = vmatpush2.bf16.msra.mxu0 0
      %469 = vmatprep.subr.bf16.mxu0 0
      %470 = vmatpush2.bf16.msra.mxu0 0
      %471 = vmatprep.mubr.bf16.mxu0 0
      %472 = vmatmul.mubr.bf16.gmra.mxu0 %v437
      %v473 = vpop.f32.mrf.mxu0
      %v474 = vadd.f32 %v181, %v473
      %v475 = vpop.f32.mrf.mxu0
      %v476 = vadd.f32 %v181, %v475
      %v477 = vpop.f32.mrf.mxu0
      %v478 = vpop.f32.mrf.mxu0
      %479 = vdwg.mxu0
      %v480 = vsel %vm248, %v474, 0.0
      %v481 = vsel %vm248, %v476, 0.0
      %v482 = vadd.f32 %v480, %v481
      %483 = vadd.xlane.f32.xlu0 %v482
      %v484 = vpop.xlane.xlu0 %483
      %v485 = vadd.f32 %v408, %v484
      %v486 = vmul.f32 %v485, 0.0009765625
      %v487 = vsub.f32 %v242, %v486
      %v488 = vsub.f32 %v244, %v486
      %v489 = vmul.f32 %v487, %v487
      %v490 = vmul.f32 %v488, %v488
      %v491 = vsel %vm248, %v489, 0.0
      %v492 = vsel %vm248, %v490, 0.0
      %v493 = vadd.f32 %v491, %v492
      %494 = vadd.xlane.f32.xlu0 %v493
      %v495 = vpop.xlane.xlu0 %494
      %v496 = vadd.f32 %v495, 0.0
      %v497 = vsub.f32 %v320, %v486
      %v498 = vsub.f32 %v322, %v486
      %v499 = vmul.f32 %v497, %v497
      %v500 = vmul.f32 %v498, %v498
      %v501 = vsel %vm248, %v499, 0.0
      %v502 = vsel %vm248, %v500, 0.0
      %v503 = vadd.f32 %v501, %v502
      %504 = vadd.xlane.f32.xlu0 %v503
      %v505 = vpop.xlane.xlu0 %504
      %v506 = vadd.f32 %v496, %v505
      %v507 = vsub.f32 %v397, %v486
      %v508 = vsub.f32 %v399, %v486
      %v509 = vmul.f32 %v507, %v507
      %v510 = vmul.f32 %v508, %v508
      %v511 = vsel %vm248, %v509, 0.0
      %v512 = vsel %vm248, %v510, 0.0
      %v513 = vadd.f32 %v511, %v512
      %514 = vadd.xlane.f32.xlu0 %v513
      %v515 = vpop.xlane.xlu0 %514
      %v516 = vadd.f32 %v506, %v515
      %v517 = vsub.f32 %v474, %v486
      %v518 = vsub.f32 %v476, %v486
      %v519 = vmul.f32 %v517, %v517
      %v520 = vmul.f32 %v518, %v518
      %v521 = vsel %vm248, %v519, 0.0
      %v522 = vsel %vm248, %v520, 0.0
      %v523 = vadd.f32 %v521, %v522
      %524 = vadd.xlane.f32.xlu0 %v523
      %v525 = vpop.xlane.xlu0 %524
      %v526 = vadd.f32 %v516, %v525
      %v527 = vmul.f32 %v526, 0.0009765625
      %v528 = vadd.f32 %v527, 1e-05
      %v529 = vrsqrt.pop %v528
      %v530 = vmul.f32 %v487, %v529
      %v531 = vmul.f32 %v488, %v529
      %v532 = vmax.f32 %v530, 0.0
      %v533 = vmax.f32 %v531, 0.0
      %v536 = vcombine.low %v532, %v533
      %538 = vst [vmem:[%s170] sm:$0xff] %v536
      %v539 = vmul.f32 %v497, %v529
      %v540 = vmul.f32 %v498, %v529
      %v541 = vmax.f32 %v539, 0.0
      %v542 = vmax.f32 %v540, 0.0
      %v545 = vcombine.low %v541, %v542
      %s547 = scalar_lea.vmem %s170, 8
      %548 = vst [vmem:[%s547] sm:$0xff] %v545
      %v549 = vmul.f32 %v507, %v529
      %v550 = vmul.f32 %v508, %v529
      %v551 = vmax.f32 %v549, 0.0
      %v552 = vmax.f32 %v550, 0.0
      %v555 = vcombine.low %v551, %v552
      %s557 = scalar_lea.vmem %s170, 16
      %558 = vst [vmem:[%s557] sm:$0xff] %v555
      %v559 = vmul.f32 %v517, %v529
      %v560 = vmul.f32 %v518, %v529
      %v561 = vmax.f32 %v559, 0.0
      %v562 = vmax.f32 %v560, 0.0
      %v565 = vcombine.low %v561, %v562
      %s567 = scalar_lea.vmem %s170, 24
      %568 = vst [vmem:[%s567] sm:$0xff] %v565
      %p569 = scmp.lt.s32.totalorder %s14, 1
      %s570 = scalar_select %p569, %s14, 1
      %s571 = smul.addr %s570, 8
      %s572 = smul.addr %s571, 4
      %s573 = scalar_lea.vmem %s3, %s572
      // Predicated region
      $region33: #{decoder_forward.4} parent=31 // pred_check
        %p574 = pneg %p100
      $region34: #{decoder_forward.4} parent=31 // pred_check_branch
        %576 = sbr.rel (%p574) target = $region36
      $region35: #{decoder_forward.4} parent=31 // pred_region
        _
      $region36: #{decoder_forward.4} parent=31 // pred_fallthru
        _
    $region32: #{decoder_forward.4} parent=5 // pred_fallthru
      _
    %p577 = scmp.le.s32.totalorder 2, %s9
    // Predicated region
    $region37: #{decoder_forward.4} parent=5 // pred_check
      %p578 = pneg %p577
    $region38: #{decoder_forward.4} parent=5 // pred_check_branch
      %580 = sbr.rel (%p578) target = $region40
    $region39: #{decoder_forward.4} parent=5 // pred_region
      %s581 = ssub.s32 %s9, 2
      // Predicated region
      $region41: #{decoder_forward.4} parent=39 // pred_check
        %p582 = pneg %p106
      $region42: #{decoder_forward.4} parent=39 // pred_check_branch
        %584 = sbr.rel (%p582) target = $region44
      $region43: #{decoder_forward.4} parent=39 // pred_region
        %p585 = scmp.lt.s32.totalorder %s15, 1
        %s586 = scalar_select %p585, %s15, 1
        %s587 = smul.addr %s586, 8
        %s588 = smul.addr %s587, 4
        %s589 = scalar_lea.vmem %s3, %s588
      $region44: #{decoder_forward.4} parent=39 // pred_fallthru
        _
    $region40: #{decoder_forward.4} parent=5 // pred_fallthru
      _
  $region6: #{decoder_forward.4} parent=0 // loop_footer
    %s13 = sadd.s32 1, %s9
  $region7: #{decoder_forward.4} parent=0 // loop_footer_branch
    %8 = sbr.rel target = $region3
  $region8: #{decoder_forward.4} parent=0 // loop_exit
    _

// kernel: decoder_forward.5
$region0: #{decoder_forward.5}
  #allocation0 [shape = 'u32[]', space=smem, size = 0x4, offset = 0x4, fixed_abs, tag = 'smem constant byte address 0x4 - core index']
  #allocation1 [shape = 'u32[144,128]{1,0:T(1,128)}', space=vmem, size = 0x12000, scoped, tag = 'internal scratch']
  %s0 = inlined_call_operand.vmem [shape: bf16[2,196,1024], index: 0, kind: input, shape index: {}]
  %s1 = inlined_call_operand.vmem [shape: bf16[3,196], index: 1, kind: input, shape index: {}]
  %s2 = inlined_call_operand.vmem [shape: f32[3,1], index: 2, kind: input, shape index: {}]
  %s3 = inlined_call_operand.vmem [shape: f32[2,3,1024], index: 3, kind: output, shape index: {}]
  %s4 = sld [smem:[#allocation0]]
  $region45: #{decoder_forward.5} parent=0
    _
  %s6 = ssub.s32 1, %s4
  %s7 = scalar_select 0, %s6, %s4
  loop: start=0, step=1, limit=4
  $region2: #{decoder_forward.5} parent=0 // loop_pre_header
    _
  $region3: #{decoder_forward.5} parent=0 // loop_header
    %s9 = sphi 0, %s13
    %p10 = scmp.ge.s32.totalorder %s9, 4
    %s19 = sphi 0, %s21
    %s22 = sphi 0, %s19
    %s23 = sphi 0, %s22
    %s39 = sphi 0, %s23
    %s43 = sphi 0, %s43
    %s45 = sphi 0, %s43
    %s46 = sphi 0, %s45
    %s60 = sphi 0, %s46
    %s64 = sphi 0, %s64
    %s66 = sphi 0, %s64
    %s67 = sphi 0, %s66
    %s81 = sphi 0, %s67
    %s87 = sphi 0, %s89
    %s90 = sphi 0, %s87
    %s91 = sphi 0, %s90
    %s107 = sphi 0, %s91
  $region4: #{decoder_forward.5} parent=0 // loop_header_branch
    %12 = sbr.rel (%p10) target = $region8
  $region5: #{decoder_forward.5} parent=0 // loop_body
    %s14 = ssub.s32 %s9, 1
    %s15 = ssub.s32 %s9, 2
    %s16 = sadd.s32 %s9, 1
    %s17 = ssub.s32 %s9, %s16
    %p18 = scmp.eq.s32.totalorder %s17, 0
    %s20 = sadd.s32 %s19, 1
    %s21 = scalar_select %p18, %s19, %s20
    %p24 = pneg %p18
    %p25 = scmp.eq.s32.totalorder %s9, 1
    %p26 = por %p24, %p25
    %p27 = scmp.ne.s32.totalorder %s19, %s22
    %p28 = scmp.eq.s32.totalorder %s9, 0
    %p29 = por %p27, %p28
    %p30 = scmp.ne.s32.totalorder %s19, %s22
    %p31 = scmp.eq.s32.totalorder %s14, 1
    %p32 = por %p30, %p31
    %p33 = scmp.ne.s32.totalorder %s22, %s23
    %p34 = scmp.eq.s32.totalorder %s14, 0
    %p35 = por %p33, %p34
    %p36 = scmp.ne.s32.totalorder %s22, %s23
    %p37 = scmp.eq.s32.totalorder %s15, 1
    %p38 = por %p36, %p37
    %p40 = scmp.ne.s32.totalorder %s23, %s39
    %p41 = scmp.eq.s32.totalorder %s15, 0
    %p42 = por %p40, %p41
    %s44 = sadd.s32 %s43, 1
    %p47 = scmp.eq.s32.totalorder %s9, 1
    %p48 = scmp.ne.s32.totalorder %s43, %s45
    %p49 = scmp.eq.s32.totalorder %s9, 0
    %p50 = por %p48, %p49
    %p51 = scmp.ne.s32.totalorder %s43, %s45
    %p52 = scmp.eq.s32.totalorder %s14, 1
    %p53 = por %p51, %p52
    %p54 = scmp.ne.s32.totalorder %s45, %s46
    %p55 = scmp.eq.s32.totalorder %s14, 0
    %p56 = por %p54, %p55
    %p57 = scmp.ne.s32.totalorder %s45, %s46
    %p58 = scmp.eq.s32.totalorder %s15, 1
    %p59 = por %p57, %p58
    %p61 = scmp.ne.s32.totalorder %s46, %s60
    %p62 = scmp.eq.s32.totalorder %s15, 0
    %p63 = por %p61, %p62
    %s65 = sadd.s32 %s64, 1
    %p68 = scmp.eq.s32.totalorder %s9, 1
    %p69 = scmp.ne.s32.totalorder %s64, %s66
    %p70 = scmp.eq.s32.totalorder %s9, 0
    %p71 = por %p69, %p70
    %p72 = scmp.ne.s32.totalorder %s64, %s66
    %p73 = scmp.eq.s32.totalorder %s14, 1
    %p74 = por %p72, %p73
    %p75 = scmp.ne.s32.totalorder %s66, %s67
    %p76 = scmp.eq.s32.totalorder %s14, 0
    %p77 = por %p75, %p76
    %p78 = scmp.ne.s32.totalorder %s66, %s67
    %p79 = scmp.eq.s32.totalorder %s15, 1
    %p80 = por %p78, %p79
    %p82 = scmp.ne.s32.totalorder %s67, %s81
    %p83 = scmp.eq.s32.totalorder %s15, 0
    %p84 = por %p82, %p83
    %s85 = ssub.s32 %s9, %s16
    %p86 = scmp.eq.s32.totalorder %s85, 0
    %s88 = sadd.s32 %s87, 1
    %s89 = scalar_select %p86, %s87, %s88
    %p92 = pneg %p86
    %p93 = scmp.eq.s32.totalorder %s9, 1
    %p94 = por %p92, %p93
    %p95 = scmp.ne.s32.totalorder %s87, %s90
    %p96 = scmp.eq.s32.totalorder %s9, 0
    %p97 = por %p95, %p96
    %p98 = scmp.ne.s32.totalorder %s87, %s90
    %p99 = scmp.eq.s32.totalorder %s14, 1
    %p100 = por %p98, %p99
    %p101 = scmp.ne.s32.totalorder %s90, %s91
    %p102 = scmp.eq.s32.totalorder %s14, 0
    %p103 = por %p101, %p102
    %p104 = scmp.ne.s32.totalorder %s90, %s91
    %p105 = scmp.eq.s32.totalorder %s15, 1
    %p106 = por %p104, %p105
    %p108 = scmp.ne.s32.totalorder %s91, %s107
    %p109 = scmp.eq.s32.totalorder %s15, 0
    %p110 = por %p108, %p109
    %p111 = scmp.le.s32.totalorder 1, %s9
    %p112 = scmp.lt.s32.totalorder %s9, 3
    %p113 = pnand %p111, %p112
    %p114 = pneg %p113
    // Predicated region
    $region9: #{decoder_forward.5} parent=5 // pred_check
      _
    $region10: #{decoder_forward.5} parent=5 // pred_check_branch
      %116 = sbr.rel (%p113) target = $region12
    $region11: #{decoder_forward.5} parent=5 // pred_region
      %s117 = ssub.s32 %s9, 1
      // Predicated region
      $region13: #{decoder_forward.5} parent=11 // pred_check
        %p118 = pneg %p56
      $region14: #{decoder_forward.5} parent=11 // pred_check_branch
        %120 = sbr.rel (%p118) target = $region16
      $region15: #{decoder_forward.5} parent=11 // pred_region
        _
      $region16: #{decoder_forward.5} parent=11 // pred_fallthru
        _
      // Predicated region
      $region17: #{decoder_forward.5} parent=11 // pred_check
        %p121 = pneg %p77
      $region18: #{decoder_forward.5} parent=11 // pred_check_branch
        %123 = sbr.rel (%p121) target = $region20
      $region19: #{decoder_forward.5} parent=11 // pred_region
        _
      $region20: #{decoder_forward.5} parent=11 // pred_fallthru
        _
    $region12: #{decoder_forward.5} parent=5 // pred_fallthru
      _
    %p124 = scmp.lt.s32.totalorder %s9, 2
    // Predicated region
    $region21: #{decoder_forward.5} parent=5 // pred_check
      %p125 = pneg %p124
    $region22: #{decoder_forward.5} parent=5 // pred_check_branch
      %127 = sbr.rel (%p125) target = $region24
    $region23: #{decoder_forward.5} parent=5 // pred_region
      // Predicated region
      $region25: #{decoder_forward.5} parent=23 // pred_check
        %p128 = pneg %p29
      $region26: #{decoder_forward.5} parent=23 // pred_check_branch
        %130 = sbr.rel (%p128) target = $region28
      $region27: #{decoder_forward.5} parent=23 // pred_region
        %p131 = scmp.lt.s32.totalorder %s9, 1
        %s132 = scalar_select %p131, %s9, 1
        %s133 = smul.addr %s132, 200
        %s134 = smul.addr %s133, 4
        %s135 = scalar_lea.vmem %s0, %s134
      $region28: #{decoder_forward.5} parent=23 // pred_fallthru
        _
    $region24: #{decoder_forward.5} parent=5 // pred_fallthru
      _
    %p136 = scmp.le.s32.totalorder 1, %s9
    %p137 = scmp.lt.s32.totalorder %s9, 3
    %p138 = pnand %p136, %p137
    %p139 = pneg %p138
    // Predicated region
    $region29: #{decoder_forward.5} parent=5 // pred_check
      _
    $region30: #{decoder_forward.5} parent=5 // pred_check_branch
      %141 = sbr.rel (%p138) target = $region32
    $region31: #{decoder_forward.5} parent=5 // pred_region
      %s142 = ssub.s32 %s9, 1
      %p143 = scmp.lt.s32.totalorder %s14, 1
      %s144 = scalar_select %p143, %s14, 1
      %s145 = smul.addr %s144, 200
      %s146 = smul.addr %s145, 4
      %s147 = scalar_lea.vmem %s0, %s146
      %p148 = pneg %p35
      %p149 = pneg %p32
      %p150 = pneg %p56
      %p151 = pneg %p53
      %p152 = pneg %p77
      %p153 = pneg %p74
      %p154 = pneg %p103
      %p155 = pneg %p100
      %p156 = scmp.lt.s32.totalorder %s14, 1
      %s157 = scalar_select %p156, %s14, 1
      %s158 = smul.addr %s157, 8
      %s159 = smul.addr %s158, 4
      %s160 = scalar_lea.vmem %s3, %s159
      %p161 = scmp.lt.s32.totalorder %s14, 1
      %s162 = scalar_select %p161, %s14, 1
      %s163 = smul.addr %s162, 200
      %s164 = smul.addr %s163, 4
      %s165 = scalar_lea.vmem %s0, %s164
      %p166 = scmp.lt.s32.totalorder %s14, 1
      %s167 = scalar_select %p166, %s14, 1
      %s168 = smul.addr %s167, 8
      %s169 = smul.addr %s168, 4
      %s170 = scalar_lea.vmem %s3, %s169
      %v172 = vld [vmem:[%s1] sm:$0xf]
      %v173 = vld [vmem:[%s165] sm:$0xff]
      %v174 = vld [vmem:[%s165 + $0x8] sm:$0xff]
      %v175 = vld [vmem:[%s165 + $0x10] sm:$0xff]
      %v176 = vld [vmem:[%s165 + $0x18] sm:$0xff]
      %v177 = vld [vmem:[%s165 + $0x20] sm:$0xff]
      %v178 = vld [vmem:[%s165 + $0x28] sm:$0xff]
      %v179 = vld [vmem:[%s165 + $0x30] sm:$0xff]
      %v180 = vld [vmem:[%s165 + $0x38] sm:$0xff]
      %v181 = vld [vmem:[%s165 + $0x40] sm:$0xff]
      %v182 = vld [vmem:[%s165 + $0x48] sm:$0xff]
      %v183 = vld [vmem:[%s165 + $0x50] sm:$0xff]
      %v184 = vld [vmem:[%s165 + $0x58] sm:$0xff]
      %v185 = vld [vmem:[%s165 + $0x60] sm:$0xff]
      %v186 = vld [vmem:[%s165 + $0x68] sm:$0xff]
      %v187 = vld [vmem:[%s165 + $0x70] sm:$0xff]
      %v188 = vld [vmem:[%s165 + $0x78] sm:$0xff]
      %v189 = vld [vmem:[%s165 + $0x80] sm:$0xff]
      %v190 = vld [vmem:[%s165 + $0x88] sm:$0xff]
      %v191 = vld [vmem:[%s165 + $0x90] sm:$0xff]
      %v192 = vld [vmem:[%s165 + $0x98] sm:$0xff]
      %v193 = vld [vmem:[%s165 + $0xa0] sm:$0xff]
      %v194 = vld [vmem:[%s165 + $0xa8] sm:$0xff]
      %v195 = vld [vmem:[%s165 + $0xb0] sm:$0xff]
      %v196 = vld [vmem:[%s165 + $0xb8] sm:$0xff]
      %v197 = vld [vmem:[%s165 + $0xc0] sm:$0xff]
      %v198 = vld [vmem:[%s165 + $0xc8] sm:$0xff]
      %v199 = vld [vmem:[%s165 + $0xd0] sm:$0xff]
      %v200 = vld [vmem:[%s165 + $0xd8] sm:$0xff]
      %v201 = vld [vmem:[%s165 + $0xe0] sm:$0xff]
      %v202 = vld [vmem:[%s165 + $0xe8] sm:$0xff]
      %v203 = vld [vmem:[%s165 + $0xf0] sm:$0xff]
      %v204 = vld [vmem:[%s165 + $0xf8] sm:$0xff]
      %v205 = vld [vmem:[%s165 + $0x100] sm:$0xff]
      %v206 = vld [vmem:[%s165 + $0x108] sm:$0xff]
      %v207 = vld [vmem:[%s165 + $0x110] sm:$0xff]
      %v208 = vld [vmem:[%s165 + $0x118] sm:$0xff]
      %v209 = vld [vmem:[%s165 + $0x120] sm:$0xff]
      %v210 = vld [vmem:[%s165 + $0x128] sm:$0xff]
      %v211 = vld [vmem:[%s165 + $0x130] sm:$0xff]
      %v212 = vld [vmem:[%s165 + $0x138] sm:$0xff]
      %v213 = vld [vmem:[%s165 + $0x140] sm:$0xff]
      %v214 = vld [vmem:[%s165 + $0x148] sm:$0xff]
      %v215 = vld [vmem:[%s165 + $0x150] sm:$0xff]
      %v216 = vld [vmem:[%s165 + $0x158] sm:$0xff]
      %v217 = vld [vmem:[%s165 + $0x160] sm:$0xff]
      %v218 = vld [vmem:[%s165 + $0x168] sm:$0xff]
      %v219 = vld [vmem:[%s165 + $0x170] sm:$0xff]
      %v220 = vld [vmem:[%s165 + $0x178] sm:$0xff]
      %v221 = vld [vmem:[%s165 + $0x180] sm:$0xff]
      %v222 = vld [vmem:[%s165 + $0x188] sm:$0xff]
      %v223 = vld [vmem:[%s165 + $0x190] sm:$0xff]
      %v224 = vld [vmem:[%s165 + $0x198] sm:$0xff]
      %v225 = vld [vmem:[%s165 + $0x1a0] sm:$0xff]
      %v226 = vld [vmem:[%s165 + $0x1a8] sm:$0xff]
      %v227 = vld [vmem:[%s165 + $0x1b0] sm:$0xff]
      %v228 = vld [vmem:[%s165 + $0x1b8] sm:$0xff]
      %v229 = vld [vmem:[%s165 + $0x1c0] sm:$0xff]
      %v230 = vld [vmem:[%s165 + $0x1c8] sm:$0xff]
      %v231 = vld [vmem:[%s165 + $0x1d0] sm:$0xff]
      %v232 = vld [vmem:[%s165 + $0x1d8] sm:$0xff]
      %v233 = vld [vmem:[%s165 + $0x1e0] sm:$0xff]
      %v234 = vld [vmem:[%s165 + $0x1e8] sm:$0xff]
      %v235 = vld [vmem:[%s165 + $0x1f0] sm:$0xff]
      %v236 = vld [vmem:[%s165 + $0x1f8] sm:$0xff]
      %v237 = vld [vmem:[%s165 + $0x200] sm:$0xff]
      %v238 = vld [vmem:[%s165 + $0x208] sm:$0xff]
      %v239 = vld [vmem:[%s165 + $0x210] sm:$0xff]
      %v240 = vld [vmem:[%s165 + $0x218] sm:$0xff]
      %v241 = vld [vmem:[%s165 + $0x220] sm:$0xff]
      %v242 = vld [vmem:[%s165 + $0x228] sm:$0xff]
      %v243 = vld [vmem:[%s165 + $0x230] sm:$0xff]
      %v244 = vld [vmem:[%s165 + $0x238] sm:$0xff]
      %v245 = vld [vmem:[%s165 + $0x240] sm:$0xff]
      %v246 = vld [vmem:[%s165 + $0x248] sm:$0xff]
      %v247 = vld [vmem:[%s165 + $0x250] sm:$0xff]
      %v248 = vld [vmem:[%s165 + $0x258] sm:$0xff]
      %v249 = vld [vmem:[%s165 + $0x260] sm:$0xff]
      %v250 = vld [vmem:[%s165 + $0x268] sm:$0xff]
      %v251 = vld [vmem:[%s165 + $0x270] sm:$0xff]
      %v252 = vld [vmem:[%s165 + $0x278] sm:$0xff]
      %v253 = vld [vmem:[%s165 + $0x280] sm:$0xff]
      %v254 = vld [vmem:[%s165 + $0x288] sm:$0xff]
      %v255 = vld [vmem:[%s165 + $0x290] sm:$0xff]
      %v256 = vld [vmem:[%s165 + $0x298] sm:$0xff]
      %v257 = vld [vmem:[%s165 + $0x2a0] sm:$0xff]
      %v258 = vld [vmem:[%s165 + $0x2a8] sm:$0xff]
      %v259 = vld [vmem:[%s165 + $0x2b0] sm:$0xff]
      %v260 = vld [vmem:[%s165 + $0x2b8] sm:$0xff]
      %v261 = vld [vmem:[%s165 + $0x2c0] sm:$0xff]
      %v262 = vld [vmem:[%s165 + $0x2c8] sm:$0xff]
      %v263 = vld [vmem:[%s165 + $0x2d0] sm:$0xff]
      %v264 = vld [vmem:[%s165 + $0x2d8] sm:$0xff]
      %v265 = vld [vmem:[%s165 + $0x2e0] sm:$0xff]
      %v266 = vld [vmem:[%s165 + $0x2e8] sm:$0xff]
      %v267 = vld [vmem:[%s165 + $0x2f0] sm:$0xff]
      %v268 = vld [vmem:[%s165 + $0x2f8] sm:$0xff]
      %v269 = vld [vmem:[%s165 + $0x300] sm:$0x33]
      %v270 = vld [vmem:[%s165 + $0x308] sm:$0x33]
      %v271 = vld [vmem:[%s165 + $0x310] sm:$0x33]
      %v272 = vld [vmem:[%s165 + $0x318] sm:$0x33]
      %v273 = vld [vmem:[%s2] sm:$0x7]
      %275 = vset.pattern.permute.xlu0 0
      %276 = vperm.xlu0 %275, %v273
      %v277 = vpop.permute.xlu0 %276
      %v281 = vunpack.c.l.s4 1983009808
      %v282 = vunpack.c.0.s8 %v281
      %v283 = vlaneseq
      %v284 = vshrl.u32 %v283, 7
      %v285 = vsub.s32 %v282, %v284
      %v286 = vrot.slane %v172, %v285
      %v287 = vcombine.high %v286, %v286
      %v389 = vunpack.c.l.b16 %v173
      %v390 = vunpack.c.h.b16 %v173
      %v391 = vunpack.c.l.b16 %v174
      %v392 = vunpack.c.h.b16 %v174
      %v393 = vunpack.c.l.b16 %v175
      %v394 = vunpack.c.h.b16 %v175
      %v395 = vunpack.c.l.b16 %v176
      %v396 = vunpack.c.h.b16 %v176
      %v397 = vunpack.c.l.b16 %v177
      %v398 = vunpack.c.h.b16 %v177
      %v399 = vunpack.c.l.b16 %v178
      %v400 = vunpack.c.h.b16 %v178
      %v401 = vunpack.c.l.b16 %v179
      %v402 = vunpack.c.h.b16 %v179
      %v403 = vunpack.c.l.b16 %v180
      %v404 = vunpack.c.h.b16 %v180
      %v405 = vunpack.c.l.b16 %v181
      %v406 = vunpack.c.h.b16 %v181
      %v407 = vunpack.c.l.b16 %v182
      %v408 = vunpack.c.h.b16 %v182
      %v409 = vunpack.c.l.b16 %v183
      %v410 = vunpack.c.h.b16 %v183
      %v411 = vunpack.c.l.b16 %v184
      %v412 = vunpack.c.h.b16 %v184
      %v413 = vunpack.c.l.b16 %v185
      %v414 = vunpack.c.h.b16 %v185
      %v415 = vunpack.c.l.b16 %v186
      %v416 = vunpack.c.h.b16 %v186
      %v417 = vunpack.c.l.b16 %v187
      %v418 = vunpack.c.h.b16 %v187
      %v419 = vunpack.c.l.b16 %v188
      %v420 = vunpack.c.h.b16 %v188
      %v421 = vunpack.c.l.b16 %v189
      %v422 = vunpack.c.h.b16 %v189
      %v423 = vunpack.c.l.b16 %v190
      %v424 = vunpack.c.h.b16 %v190
      %v425 = vunpack.c.l.b16 %v191
      %v426 = vunpack.c.h.b16 %v191
      %v427 = vunpack.c.l.b16 %v192
      %v428 = vunpack.c.h.b16 %v192
      %v429 = vunpack.c.l.b16 %v193
      %v430 = vunpack.c.h.b16 %v193
      %v431 = vunpack.c.l.b16 %v194
      %v432 = vunpack.c.h.b16 %v194
      %v433 = vunpack.c.l.b16 %v195
      %v434 = vunpack.c.h.b16 %v195
      %v435 = vunpack.c.l.b16 %v196
      %v436 = vunpack.c.h.b16 %v196
      %v437 = vunpack.c.l.b16 %v197
      %v438 = vunpack.c.h.b16 %v197
      %v439 = vunpack.c.l.b16 %v198
      %v440 = vunpack.c.h.b16 %v198
      %v441 = vunpack.c.l.b16 %v199
      %v442 = vunpack.c.h.b16 %v199
      %v443 = vunpack.c.l.b16 %v200
      %v444 = vunpack.c.h.b16 %v200
      %v445 = vunpack.c.l.b16 %v201
      %v446 = vunpack.c.h.b16 %v201
      %v447 = vunpack.c.l.b16 %v202
      %v448 = vunpack.c.h.b16 %v202
      %v449 = vunpack.c.l.b16 %v203
      %v450 = vunpack.c.h.b16 %v203
      %v451 = vunpack.c.l.b16 %v204
      %v452 = vunpack.c.h.b16 %v204
      %v453 = vunpack.c.l.b16 %v205
      %v454 = vunpack.c.h.b16 %v205
      %v455 = vunpack.c.l.b16 %v206
      %v456 = vunpack.c.h.b16 %v206
      %v457 = vunpack.c.l.b16 %v207
      %v458 = vunpack.c.h.b16 %v207
      %v459 = vunpack.c.l.b16 %v208
      %v460 = vunpack.c.h.b16 %v208
      %v461 = vunpack.c.l.b16 %v209
      %v462 = vunpack.c.h.b16 %v209
      %v463 = vunpack.c.l.b16 %v210
      %v464 = vunpack.c.h.b16 %v210
      %v465 = vunpack.c.l.b16 %v211
      %v466 = vunpack.c.h.b16 %v211
      %v467 = vunpack.c.l.b16 %v212
      %v468 = vunpack.c.h.b16 %v212
      %v469 = vunpack.c.l.b16 %v213
      %v470 = vunpack.c.h.b16 %v213
      %v471 = vunpack.c.l.b16 %v214
      %v472 = vunpack.c.h.b16 %v214
      %v473 = vunpack.c.l.b16 %v215
      %v474 = vunpack.c.h.b16 %v215
      %v475 = vunpack.c.l.b16 %v216
      %v476 = vunpack.c.h.b16 %v216
      %v477 = vunpack.c.l.b16 %v217
      %v478 = vunpack.c.h.b16 %v217
      %v479 = vunpack.c.l.b16 %v218
      %v480 = vunpack.c.h.b16 %v218
      %v481 = vunpack.c.l.b16 %v219
      %v482 = vunpack.c.h.b16 %v219
      %v483 = vunpack.c.l.b16 %v220
      %v484 = vunpack.c.h.b16 %v220
      %v485 = vunpack.c.l.b16 %v221
      %v486 = vunpack.c.h.b16 %v221
      %v487 = vunpack.c.l.b16 %v222
      %v488 = vunpack.c.h.b16 %v222
      %v489 = vunpack.c.l.b16 %v223
      %v490 = vunpack.c.h.b16 %v223
      %v491 = vunpack.c.l.b16 %v224
      %v492 = vunpack.c.h.b16 %v224
      %v493 = vunpack.c.l.b16 %v225
      %v494 = vunpack.c.h.b16 %v225
      %v495 = vunpack.c.l.b16 %v226
      %v496 = vunpack.c.h.b16 %v226
      %v497 = vunpack.c.l.b16 %v227
      %v498 = vunpack.c.h.b16 %v227
      %v499 = vunpack.c.l.b16 %v228
      %v500 = vunpack.c.h.b16 %v228
      %v501 = vunpack.c.l.b16 %v229
      %v502 = vunpack.c.h.b16 %v229
      %v503 = vunpack.c.l.b16 %v230
      %v504 = vunpack.c.h.b16 %v230
      %v505 = vunpack.c.l.b16 %v231
      %v506 = vunpack.c.h.b16 %v231
      %v507 = vunpack.c.l.b16 %v232
      %v508 = vunpack.c.h.b16 %v232
      %v509 = vunpack.c.l.b16 %v233
      %v510 = vunpack.c.h.b16 %v233
      %v511 = vunpack.c.l.b16 %v234
      %v512 = vunpack.c.h.b16 %v234
      %v513 = vunpack.c.l.b16 %v235
      %v514 = vunpack.c.h.b16 %v235
      %v515 = vunpack.c.l.b16 %v236
      %v516 = vunpack.c.h.b16 %v236
      %v517 = vunpack.c.l.b16 %v237
      %v518 = vunpack.c.h.b16 %v237
      %v519 = vunpack.c.l.b16 %v238
      %v520 = vunpack.c.h.b16 %v238
      %v521 = vunpack.c.l.b16 %v239
      %v522 = vunpack.c.h.b16 %v239
      %v523 = vunpack.c.l.b16 %v240
      %v524 = vunpack.c.h.b16 %v240
      %v525 = vunpack.c.l.b16 %v241
      %v526 = vunpack.c.h.b16 %v241
      %v527 = vunpack.c.l.b16 %v242
      %v528 = vunpack.c.h.b16 %v242
      %v529 = vunpack.c.l.b16 %v243
      %v530 = vunpack.c.h.b16 %v243
      %v531 = vunpack.c.l.b16 %v244
      %v532 = vunpack.c.h.b16 %v244
      %v533 = vunpack.c.l.b16 %v245
      %v534 = vunpack.c.h.b16 %v245
      %v535 = vunpack.c.l.b16 %v246
      %v536 = vunpack.c.h.b16 %v246
      %v537 = vunpack.c.l.b16 %v247
      %v538 = vunpack.c.h.b16 %v247
      %v539 = vunpack.c.l.b16 %v248
      %v540 = vunpack.c.h.b16 %v248
      %v541 = vunpack.c.l.b16 %v249
      %v542 = vunpack.c.h.b16 %v249
      %v543 = vunpack.c.l.b16 %v250
      %v544 = vunpack.c.h.b16 %v250
      %v545 = vunpack.c.l.b16 %v251
      %v546 = vunpack.c.h.b16 %v251
      %v547 = vunpack.c.l.b16 %v252
      %v548 = vunpack.c.h.b16 %v252
      %v549 = vunpack.c.l.b16 %v253
      %v550 = vunpack.c.h.b16 %v253
      %v551 = vunpack.c.l.b16 %v254
      %v552 = vunpack.c.h.b16 %v254
      %v553 = vunpack.c.l.b16 %v255
      %v554 = vunpack.c.h.b16 %v255
      %v555 = vunpack.c.l.b16 %v256
      %v556 = vunpack.c.h.b16 %v256
      %v557 = vunpack.c.l.b16 %v257
      %v558 = vunpack.c.h.b16 %v257
      %v559 = vunpack.c.l.b16 %v258
      %v560 = vunpack.c.h.b16 %v258
      %v561 = vunpack.c.l.b16 %v259
      %v562 = vunpack.c.h.b16 %v259
      %v563 = vunpack.c.l.b16 %v260
      %v564 = vunpack.c.h.b16 %v260
      %v565 = vunpack.c.l.b16 %v261
      %v566 = vunpack.c.h.b16 %v261
      %v567 = vunpack.c.l.b16 %v262
      %v568 = vunpack.c.h.b16 %v262
      %v569 = vunpack.c.l.b16 %v263
      %v570 = vunpack.c.h.b16 %v263
      %v571 = vunpack.c.l.b16 %v264
      %v572 = vunpack.c.h.b16 %v264
      %v573 = vunpack.c.l.b16 %v265
      %v574 = vunpack.c.h.b16 %v265
      %v575 = vunpack.c.l.b16 %v266
      %v576 = vunpack.c.h.b16 %v266
      %v577 = vunpack.c.l.b16 %v267
      %v578 = vunpack.c.h.b16 %v267
      %v579 = vunpack.c.l.b16 %v268
      %v580 = vunpack.c.h.b16 %v268
      %v581 = vunpack.c.l.b16 %v269
      %v582 = vunpack.c.h.b16 %v269
      %v583 = vunpack.c.l.b16 %v270
      %v584 = vunpack.c.h.b16 %v270
      %v585 = vunpack.c.l.b16 %v271
      %v586 = vunpack.c.h.b16 %v271
      %v587 = vunpack.c.l.b16 %v272
      %v588 = vunpack.c.h.b16 %v272
      %v589 = vpack.c.b16 %v397, %v389
      %v590 = vpack.c.b16 %v398, %v390
      %v591 = vpack.c.b16 %v399, %v391
      %v592 = vpack.c.b16 %v400, %v392
      %v593 = vpack.c.b16 %v401, %v393
      %v594 = vpack.c.b16 %v402, %v394
      %v595 = vpack.c.b16 %v403, %v395
      %v596 = vpack.c.b16 %v404, %v396
      %v597 = vpack.c.b16 %v413, %v405
      %v598 = vpack.c.b16 %v414, %v406
      %v599 = vpack.c.b16 %v415, %v407
      %v600 = vpack.c.b16 %v416, %v408
      %v601 = vpack.c.b16 %v417, %v409
      %v602 = vpack.c.b16 %v418, %v410
      %v603 = vpack.c.b16 %v419, %v411
      %v604 = vpack.c.b16 %v420, %v412
      %v605 = vpack.c.b16 %v429, %v421
      %v606 = vpack.c.b16 %v430, %v422
      %v607 = vpack.c.b16 %v431, %v423
      %v608 = vpack.c.b16 %v432, %v424
      %v609 = vpack.c.b16 %v433, %v425
      %v610 = vpack.c.b16 %v434, %v426
      %v611 = vpack.c.b16 %v435, %v427
      %v612 = vpack.c.b16 %v436, %v428
      %v613 = vpack.c.b16 %v445, %v437
      %v614 = vpack.c.b16 %v446, %v438
      %v615 = vpack.c.b16 %v447, %v439
      %v616 = vpack.c.b16 %v448, %v440
      %v617 = vpack.c.b16 %v449, %v441
      %v618 = vpack.c.b16 %v450, %v442
      %v619 = vpack.c.b16 %v451, %v443
      %v620 = vpack.c.b16 %v452, %v444
      %v621 = vpack.c.b16 %v461, %v453
      %v622 = vpack.c.b16 %v462, %v454
      %v623 = vpack.c.b16 %v463, %v455
      %v624 = vpack.c.b16 %v464, %v456
      %v625 = vpack.c.b16 %v465, %v457
      %v626 = vpack.c.b16 %v466, %v458
      %v627 = vpack.c.b16 %v467, %v459
      %v628 = vpack.c.b16 %v468, %v460
      %v629 = vpack.c.b16 %v477, %v469
      %v630 = vpack.c.b16 %v478, %v470
      %v631 = vpack.c.b16 %v479, %v471
      %v632 = vpack.c.b16 %v480, %v472
      %v633 = vpack.c.b16 %v481, %v473
      %v634 = vpack.c.b16 %v482, %v474
      %v635 = vpack.c.b16 %v483, %v475
      %v636 = vpack.c.b16 %v484, %v476
      %v637 = vpack.c.b16 %v493, %v485
      %v638 = vpack.c.b16 %v494, %v486
      %v639 = vpack.c.b16 %v495, %v487
      %v640 = vpack.c.b16 %v496, %v488
      %v641 = vpack.c.b16 %v497, %v489
      %v642 = vpack.c.b16 %v498, %v490
      %v643 = vpack.c.b16 %v499, %v491
      %v644 = vpack.c.b16 %v500, %v492
      %v645 = vpack.c.b16 %v509, %v501
      %v646 = vpack.c.b16 %v510, %v502
      %v647 = vpack.c.b16 %v511, %v503
      %v648 = vpack.c.b16 %v512, %v504
      %v649 = vpack.c.b16 %v513, %v505
      %v650 = vpack.c.b16 %v514, %v506
      %v651 = vpack.c.b16 %v515, %v507
      %v652 = vpack.c.b16 %v516, %v508
      %v653 = vpack.c.b16 %v525, %v517
      %v654 = vpack.c.b16 %v526, %v518
      %v655 = vpack.c.b16 %v527, %v519
      %v656 = vpack.c.b16 %v528, %v520
      %v657 = vpack.c.b16 %v529, %v521
      %v658 = vpack.c.b16 %v530, %v522
      %v659 = vpack.c.b16 %v531, %v523
      %v660 = vpack.c.b16 %v532, %v524
      %v661 = vpack.c.b16 %v541, %v533
      %v662 = vpack.c.b16 %v542, %v534
      %v663 = vpack.c.b16 %v543, %v535
      %v664 = vpack.c.b16 %v544, %v536
      %v665 = vpack.c.b16 %v545, %v537
      %v666 = vpack.c.b16 %v546, %v538
      %v667 = vpack.c.b16 %v547, %v539
      %v668 = vpack.c.b16 %v548, %v540
      %v669 = vpack.c.b16 %v557, %v549
      %v670 = vpack.c.b16 %v558, %v550
      %v671 = vpack.c.b16 %v559, %v551
      %v672 = vpack.c.b16 %v560, %v552
      %v673 = vpack.c.b16 %v561, %v553
      %v674 = vpack.c.b16 %v562, %v554
      %v675 = vpack.c.b16 %v563, %v555
      %v676 = vpack.c.b16 %v564, %v556
      %v677 = vpack.c.b16 %v573, %v565
      %v678 = vpack.c.b16 %v574, %v566
      %v679 = vpack.c.b16 %v575, %v567
      %v680 = vpack.c.b16 %v576, %v568
      %v681 = vpack.c.b16 %v577, %v569
      %v682 = vpack.c.b16 %v578, %v570
      %v683 = vpack.c.b16 %v579, %v571
      %v684 = vpack.c.b16 %v580, %v572
      %v685 = vpack.c.b16 %v581, %v581
      %v686 = vpack.c.b16 %v582, %v582
      %v687 = vpack.c.b16 %v583, %v583
      %v688 = vpack.c.b16 %v584, %v584
      %v689 = vpack.c.b16 %v585, %v585
      %v690 = vpack.c.b16 %v586, %v586
      %v691 = vpack.c.b16 %v587, %v587
      %v692 = vpack.c.b16 %v588, %v588
      %vm789 = vcmask 556032
      %v791 = vsel %vm789, %v287, 0
      %vm793 = vcmask 1041408
      %v795 = vsel %vm793, %v685, 0
      %v798 = vsel %vm793, %v686, 0
      %v801 = vsel %vm793, %v687, 0
      %v804 = vsel %vm793, %v688, 0
      %v807 = vsel %vm793, %v689, 0
      %v810 = vsel %vm793, %v690, 0
      %v813 = vsel %vm793, %v691, 0
      %v816 = vsel %vm793, %v692, 0
      %818 = vmatprep.subr.bf16.mxu0 %v646
      %819 = vmatpush1.bf16.msra.mxu0 %v645
      %820 = vmatprep.subr.bf16.mxu0 %v638
      %821 = vmatpush1.bf16.msra.mxu0 %v637
      %822 = vmatprep.subr.bf16.mxu0 %v630
      %823 = vmatpush1.bf16.msra.mxu0 %v629
      %824 = vmatprep.subr.bf16.mxu0 %v622
      %825 = vmatpush1.bf16.msra.mxu0 %v621
      %826 = vmatprep.subr.bf16.mxu0 %v614
      %827 = vmatpush1.bf16.msra.mxu0 %v613
      %828 = vmatprep.subr.bf16.mxu0 %v606
      %829 = vmatpush1.bf16.msra.mxu0 %v605
      %830 = vmatprep.subr.bf16.mxu0 %v598
      %831 = vmatpush1.bf16.msra.mxu0 %v597
      %832 = vmatprep.subr.bf16.mxu0 %v590
      %833 = vmatpush1.bf16.msra.mxu0 %v589
      %834 = vmatprep.subr.bf16.mxu0 0
      %835 = vmatpush2.bf16.msra.mxu0 0
      %836 = vmatprep.subr.bf16.mxu0 0
      %837 = vmatpush2.bf16.msra.mxu0 0
      %838 = vmatprep.subr.bf16.mxu0 0
      %839 = vmatpush2.bf16.msra.mxu0 0
      %840 = vmatprep.subr.bf16.mxu0 %v798
      %841 = vmatpush2.bf16.msra.mxu0 %v795
      %842 = vmatprep.subr.bf16.mxu0 %v678
      %843 = vmatpush2.bf16.msra.mxu0 %v677
      %844 = vmatprep.subr.bf16.mxu0 %v670
      %845 = vmatpush2.bf16.msra.mxu0 %v669
      %846 = vmatprep.subr.bf16.mxu0 %v662
      %847 = vmatpush2.bf16.msra.mxu0 %v661
      %848 = vmatprep.subr.bf16.mxu0 %v654
      %849 = vmatpush2.bf16.msra.mxu0 %v653
      %850 = vmatprep.mubr.bf16.mxu0 %v791
      %851 = vmatmul.mubr.bf16.gmra.mxu0 %v286
      %v852 = vpop.f32.mrf.mxu0
      %v853 = vadd.f32 %v277, %v852
      %v854 = vpop.f32.mrf.mxu0
      %v855 = vadd.f32 %v277, %v854
      %v856 = vpop.f32.mrf.mxu0
      %v857 = vpop.f32.mrf.mxu0
      %858 = vdwg.mxu0
      %859 = vmatprep.subr.bf16.mxu0 %v648
      %860 = vmatpush1.bf16.msra.mxu0 %v647
      %861 = vmatprep.subr.bf16.mxu0 %v640
      %862 = vmatpush1.bf16.msra.mxu0 %v639
      %863 = vmatprep.subr.bf16.mxu0 %v632
      %864 = vmatpush1.bf16.msra.mxu0 %v631
      %865 = vmatprep.subr.bf16.mxu0 %v624
      %866 = vmatpush1.bf16.msra.mxu0 %v623
      %867 = vmatprep.subr.bf16.mxu0 %v616
      %868 = vmatpush1.bf16.msra.mxu0 %v615
      %869 = vmatprep.subr.bf16.mxu0 %v608
      %870 = vmatpush1.bf16.msra.mxu0 %v607
      %871 = vmatprep.subr.bf16.mxu0 %v600
      %872 = vmatpush1.bf16.msra.mxu0 %v599
      %873 = vmatprep.subr.bf16.mxu0 %v592
      %874 = vmatpush1.bf16.msra.mxu0 %v591
      %875 = vmatprep.subr.bf16.mxu0 0
      %876 = vmatpush2.bf16.msra.mxu0 0
      %877 = vmatprep.subr.bf16.mxu0 0
      %878 = vmatpush2.bf16.msra.mxu0 0
      %879 = vmatprep.subr.bf16.mxu0 0
      %880 = vmatpush2.bf16.msra.mxu0 0
      %881 = vmatprep.subr.bf16.mxu0 %v804
      %882 = vmatpush2.bf16.msra.mxu0 %v801
      %883 = vmatprep.subr.bf16.mxu0 %v680
      %884 = vmatpush2.bf16.msra.mxu0 %v679
      %885 = vmatprep.subr.bf16.mxu0 %v672
      %886 = vmatpush2.bf16.msra.mxu0 %v671
      %887 = vmatprep.subr.bf16.mxu0 %v664
      %888 = vmatpush2.bf16.msra.mxu0 %v663
      %889 = vmatprep.subr.bf16.mxu0 %v656
      %890 = vmatpush2.bf16.msra.mxu0 %v655
      %891 = vmatprep.mubr.bf16.mxu0 %v791
      %892 = vmatmul.mubr.bf16.gmra.mxu0 %v286
      %v893 = vpop.f32.mrf.mxu0
      %v894 = vadd.f32 %v277, %v893
      %v895 = vpop.f32.mrf.mxu0
      %v896 = vadd.f32 %v277, %v895
      %v897 = vpop.f32.mrf.mxu0
      %v898 = vpop.f32.mrf.mxu0
      %899 = vdwg.mxu0
      %900 = vmatprep.subr.bf16.mxu0 %v650
      %901 = vmatpush1.bf16.msra.mxu0 %v649
      %902 = vmatprep.subr.bf16.mxu0 %v642
      %903 = vmatpush1.bf16.msra.mxu0 %v641
      %904 = vmatprep.subr.bf16.mxu0 %v634
      %905 = vmatpush1.bf16.msra.mxu0 %v633
      %906 = vmatprep.subr.bf16.mxu0 %v626
      %907 = vmatpush1.bf16.msra.mxu0 %v625
      %908 = vmatprep.subr.bf16.mxu0 %v618
      %909 = vmatpush1.bf16.msra.mxu0 %v617
      %910 = vmatprep.subr.bf16.mxu0 %v610
      %911 = vmatpush1.bf16.msra.mxu0 %v609
      %912 = vmatprep.subr.bf16.mxu0 %v602
      %913 = vmatpush1.bf16.msra.mxu0 %v601
      %914 = vmatprep.subr.bf16.mxu0 %v594
      %915 = vmatpush1.bf16.msra.mxu0 %v593
      %916 = vmatprep.subr.bf16.mxu0 0
      %917 = vmatpush2.bf16.msra.mxu0 0
      %918 = vmatprep.subr.bf16.mxu0 0
      %919 = vmatpush2.bf16.msra.mxu0 0
      %920 = vmatprep.subr.bf16.mxu0 0
      %921 = vmatpush2.bf16.msra.mxu0 0
      %922 = vmatprep.subr.bf16.mxu0 %v810
      %923 = vmatpush2.bf16.msra.mxu0 %v807
      %924 = vmatprep.subr.bf16.mxu0 %v682
      %925 = vmatpush2.bf16.msra.mxu0 %v681
      %926 = vmatprep.subr.bf16.mxu0 %v674
      %927 = vmatpush2.bf16.msra.mxu0 %v673
      %928 = vmatprep.subr.bf16.mxu0 %v666
      %929 = vmatpush2.bf16.msra.mxu0 %v665
      %930 = vmatprep.subr.bf16.mxu0 %v658
      %931 = vmatpush2.bf16.msra.mxu0 %v657
      %932 = vmatprep.mubr.bf16.mxu0 %v791
      %933 = vmatmul.mubr.bf16.gmra.mxu0 %v286
      %v934 = vpop.f32.mrf.mxu0
      %v935 = vadd.f32 %v277, %v934
      %v936 = vpop.f32.mrf.mxu0
      %v937 = vadd.f32 %v277, %v936
      %v938 = vpop.f32.mrf.mxu0
      %v939 = vpop.f32.mrf.mxu0
      %940 = vdwg.mxu0
      %941 = vmatprep.subr.bf16.mxu0 %v652
      %942 = vmatpush1.bf16.msra.mxu0 %v651
      %943 = vmatprep.subr.bf16.mxu0 %v644
      %944 = vmatpush1.bf16.msra.mxu0 %v643
      %945 = vmatprep.subr.bf16.mxu0 %v636
      %946 = vmatpush1.bf16.msra.mxu0 %v635
      %947 = vmatprep.subr.bf16.mxu0 %v628
      %948 = vmatpush1.bf16.msra.mxu0 %v627
      %949 = vmatprep.subr.bf16.mxu0 %v620
      %950 = vmatpush1.bf16.msra.mxu0 %v619
      %951 = vmatprep.subr.bf16.mxu0 %v612
      %952 = vmatpush1.bf16.msra.mxu0 %v611
      %953 = vmatprep.subr.bf16.mxu0 %v604
      %954 = vmatpush1.bf16.msra.mxu0 %v603
      %955 = vmatprep.subr.bf16.mxu0 %v596
      %956 = vmatpush1.bf16.msra.mxu0 %v595
      %957 = vmatprep.subr.bf16.mxu0 0
      %958 = vmatpush2.bf16.msra.mxu0 0
      %959 = vmatprep.subr.bf16.mxu0 0
      %960 = vmatpush2.bf16.msra.mxu0 0
      %961 = vmatprep.subr.bf16.mxu0 0
      %962 = vmatpush2.bf16.msra.mxu0 0
      %963 = vmatprep.subr.bf16.mxu0 %v816
      %964 = vmatpush2.bf16.msra.mxu0 %v813
      %965 = vmatprep.subr.bf16.mxu0 %v684
      %966 = vmatpush2.bf16.msra.mxu0 %v683
      %967 = vmatprep.subr.bf16.mxu0 %v676
      %968 = vmatpush2.bf16.msra.mxu0 %v675
      %969 = vmatprep.subr.bf16.mxu0 %v668
      %970 = vmatpush2.bf16.msra.mxu0 %v667
      %971 = vmatprep.subr.bf16.mxu0 %v660
      %972 = vmatpush2.bf16.msra.mxu0 %v659
      %973 = vmatprep.mubr.bf16.mxu0 %v791
      %974 = vmatmul.mubr.bf16.gmra.mxu0 %v286
      %v975 = vpop.f32.mrf.mxu0
      %v976 = vadd.f32 %v277, %v975
      %v977 = vpop.f32.mrf.mxu0
      %v978 = vadd.f32 %v277, %v977
      %v979 = vpop.f32.mrf.mxu0
      %v980 = vpop.f32.mrf.mxu0
      %981 = vdwg.mxu0
      %v990 = vcombine.low %v853, %v855
      %v991 = vcombine.low %v894, %v896
      %v992 = vcombine.low %v935, %v937
      %v993 = vcombine.low %v976, %v978
      %998 = vst [vmem:[%s170] sm:$0x77] %v990
      %999 = vst [vmem:[%s170 + $0x8] sm:$0x77] %v991
      %1000 = vst [vmem:[%s170 + $0x10] sm:$0x77] %v992
      %1001 = vst [vmem:[%s170 + $0x18] sm:$0x77] %v993
      %p1002 = scmp.lt.s32.totalorder %s14, 1
      %s1003 = scalar_select %p1002, %s14, 1
      %s1004 = smul.addr %s1003, 8
      %s1005 = smul.addr %s1004, 4
      %s1006 = scalar_lea.vmem %s3, %s1005
      // Predicated region
      $region33: #{decoder_forward.5} parent=31 // pred_check
        %p1007 = pneg %p100
      $region34: #{decoder_forward.5} parent=31 // pred_check_branch
        %1009 = sbr.rel (%p1007) target = $region36
      $region35: #{decoder_forward.5} parent=31 // pred_region
        _
      $region36: #{decoder_forward.5} parent=31 // pred_fallthru
        _
    $region32: #{decoder_forward.5} parent=5 // pred_fallthru
      _
    %p1010 = scmp.le.s32.totalorder 2, %s9
    // Predicated region
    $region37: #{decoder_forward.5} parent=5 // pred_check
      %p1011 = pneg %p1010
    $region38: #{decoder_forward.5} parent=5 // pred_check_branch
      %1013 = sbr.rel (%p1011) target = $region40
    $region39: #{decoder_forward.5} parent=5 // pred_region
      %s1014 = ssub.s32 %s9, 2
      // Predicated region
      $region41: #{decoder_forward.5} parent=39 // pred_check
        %p1015 = pneg %p106
      $region42: #{decoder_forward.5} parent=39 // pred_check_branch
        %1017 = sbr.rel (%p1015) target = $region44
      $region43: #{decoder_forward.5} parent=39 // pred_region
        %p1018 = scmp.lt.s32.totalorder %s15, 1
        %s1019 = scalar_select %p1018, %s15, 1
        %s1020 = smul.addr %s1019, 8
        %s1021 = smul.addr %s1020, 4
        %s1022 = scalar_lea.vmem %s3, %s1021
      $region44: #{decoder_forward.5} parent=39 // pred_fallthru
        _
    $region40: #{decoder_forward.5} parent=5 // pred_fallthru
      _
  $region6: #{decoder_forward.5} parent=0 // loop_footer
    %s13 = sadd.s32 1, %s9
  $region7: #{decoder_forward.5} parent=0 // loop_footer_branch
    %8 = sbr.rel target = $region3
  $region8: #{decoder_forward.5} parent=0 // loop_exit
    _

</llo_original>
